<compile_context>
chip_gen: v7x
topology: tpu7x:2x2x1
jax: 0.10.0
libtpu: 0.0.40
codegen_flags: <defaults>
</compile_context>

<pallas_src>
import functools

import jax
import jax.numpy as jnp
from jax.experimental import pallas as pl
from jax.experimental.pallas import tpu as pltpu


def _round_up(x, m):
    return ((x + m - 1) // m) * m


def _pick_hidden_tile(H, preferred):
    """Largest hidden-chunk width (multiple of 128) that divides H, else H."""
    preferred = max(128, _round_up(preferred, 128))
    for cand in (preferred, 2048, 1024, 512, 256, 128):
        if cand <= H and H % cand == 0:
            return cand
    return H  # fallback: single full-width chunk (== full dim, always legal)


def ffw_kernel(x_ref, w1_ref, b1_ref, w2_ref, b2_ref, o_ref, acc_ref):
    # Grid: (token tiles, hidden chunks).  Hidden axis is the contraction of the
    # second matmul -> accumulate partial projections in f32 VMEM scratch.
    # x_ref:  (tm, D)   bf16 token tile
    # w1_ref: (D, th)   bf16 expand-weight column chunk
    # b1_ref: (1, th)   f32
    # w2_ref: (th, D)   bf16 project-weight row chunk
    # b2_ref: (1, D)    f32
    # o_ref:  (tm, D)   output tile
    # acc_ref:(tm, D)   f32 accumulator (VMEM scratch)
    k = pl.program_id(1)

    @pl.when(k == 0)
    def _init():
        acc_ref[...] = jnp.zeros_like(acc_ref)

    # Expand matmul (MXU, bf16 operands, f32 accumulate) + bias + ReLU in f32.
    h = jnp.dot(x_ref[...], w1_ref[...], preferred_element_type=jnp.float32)
    h = jnp.maximum(h + b1_ref[...], 0.0)

    # Partial projection for this hidden chunk.
    acc_ref[...] += jnp.dot(h.astype(w2_ref.dtype), w2_ref[...],
                            preferred_element_type=jnp.float32)

    @pl.when(k == pl.num_programs(1) - 1)
    def _finalize():
        o_ref[...] = (acc_ref[...] + b2_ref[...]).astype(o_ref.dtype)


@functools.partial(jax.jit, static_argnames=("tm", "th", "compute_dtype"))
def ffw_forward(x, w1, b1, w2, b2, *, tm=256, th=512,
                compute_dtype=jnp.bfloat16):
    """x: (B, T, D) float32; W1: (D, H); W2: (H, D).  Returns (B, T, D)."""
    B, T, D = x.shape
    H = w1.shape[1]
    M = B * T

    # Token tile: multiple of 8 (sublanes), no larger than the rounded-up M.
    tm = min(_round_up(tm, 8), _round_up(M, 8))
    # Hidden chunk: multiple of 128 lanes that divides H (avoids OOB reduction).
    th = _pick_hidden_tile(H, th)

    x2d = x.reshape(M, D).astype(compute_dtype)
    w1c = w1.astype(compute_dtype)
    w2c = w2.astype(compute_dtype)
    b1_2d = b1.reshape(1, H).astype(jnp.float32)
    b2_2d = b2.reshape(1, D).astype(jnp.float32)

    grid_m = pl.cdiv(M, tm)
    grid_k = H // th

    cbytes = jnp.dtype(compute_dtype).itemsize
    obytes = jnp.dtype(x.dtype).itemsize
    cost = pl.CostEstimate(
        flops=4 * M * D * H,                       # two (M,D,H) matmuls
        transcendentals=0,
        bytes_accessed=(M * D * cbytes             # x
                        + grid_m * 2 * D * H * cbytes  # W1+W2 re-streamed per M tile
                        + (H + D) * 4              # biases
                        + M * D * obytes),         # output
    )

    out = pl.pallas_call(
        ffw_kernel,
        out_shape=jax.ShapeDtypeStruct((M, D), x.dtype),
        grid_spec=pltpu.PrefetchScalarGridSpec(
            num_scalar_prefetch=0,
            grid=(grid_m, grid_k),
            in_specs=[
                pl.BlockSpec((tm, D), lambda i, k: (i, 0)),   # x token tile
                pl.BlockSpec((D, th), lambda i, k: (0, k)),   # W1 column chunk
                pl.BlockSpec((1, th), lambda i, k: (0, k)),   # b1 chunk
                pl.BlockSpec((th, D), lambda i, k: (k, 0)),   # W2 row chunk
                pl.BlockSpec((1, D), lambda i, k: (0, 0)),    # b2
            ],
            out_specs=pl.BlockSpec((tm, D), lambda i, k: (i, 0)),
            scratch_shapes=[pltpu.VMEM((tm, D), jnp.float32)],
        ),
        compiler_params=pltpu.CompilerParams(
            dimension_semantics=("parallel", "arbitrary"),
            # Explicit budget (fits 2-deep buffering of all tiles on v5e/v6e/v7x).
            vmem_limit_bytes=48 * 1024 * 1024,
        ),
        cost_estimate=cost,
    )(x2d, w1c, b1_2d, w2c, b2_2d)

    return out.reshape(B, T, D)


def init_ffw_params(key, n_embd, ffw_widen):
    """Deterministic init mimicking nn.Linear defaults (uniform +-1/sqrt(fan_in))."""
    hidden = n_embd * ffw_widen
    k1, k2, k3, k4 = jax.random.split(key, 4)
    bound1 = 1.0 / (n_embd ** 0.5)
    bound2 = 1.0 / (hidden ** 0.5)
    # Stored already transposed: (in, out)
    w1 = jax.random.uniform(k1, (n_embd, hidden), jnp.float32, -bound1, bound1)
    b1 = jax.random.uniform(k2, (hidden,), jnp.float32, -bound1, bound1)
    w2 = jax.random.uniform(k3, (hidden, n_embd), jnp.float32, -bound2, bound2)
    b2 = jax.random.uniform(k4, (n_embd,), jnp.float32, -bound2, bound2)
    return w1, b1, w2, b2


if __name__ == "__main__":
    # Small shapes consistent with the module defaults: n_embd=256, widen=4.
    B, T, n_embd, ffw_widen = 2, 64, 256, 4

    key = jax.random.PRNGKey(0)
    kx, kp = jax.random.split(key)
    x = jax.random.normal(kx, (B, T, n_embd), jnp.float32)
    w1, b1, w2, b2 = init_ffw_params(kp, n_embd, ffw_widen)

    y = ffw_forward(x, w1, b1, w2, b2)
    y = jax.block_until_ready(y)

    # Pure-JAX reference (dropout = identity in eval mode), high-precision matmuls.
    hp = jax.lax.Precision.HIGHEST
    x2 = x.reshape(-1, n_embd)
    ref = jnp.dot(jnp.maximum(jnp.dot(x2, w1, precision=hp) + b1, 0.0),
                  w2, precision=hp) + b2
    ref = ref.reshape(B, T, n_embd)

    assert y.shape == (B, T, n_embd)
    assert y.dtype == x.dtype
    # bf16 MXU operands with f32 accumulation -> loose tolerance vs f32 reference.
    assert jnp.allclose(y, ref, atol=2e-2, rtol=2e-2), (
        "max abs diff = %g" % float(jnp.max(jnp.abs(y - ref))))

    print("KERNEL_OK")
</pallas_src>

<mosaic_0001>
module attributes {stable_mosaic.version = 11 : i64} {
  func.func @ffw_kernel(%arg0: i32, %arg1: i32, %arg2: memref<128x256xbf16, #tpu.memory_space<vmem>>, %arg3: memref<256x512xbf16, #tpu.memory_space<vmem>>, %arg4: memref<1x512xf32, #tpu.memory_space<vmem>>, %arg5: memref<512x256xbf16, #tpu.memory_space<vmem>>, %arg6: memref<1x256xf32, #tpu.memory_space<vmem>>, %arg7: memref<128x256xf32, #tpu.memory_space<vmem>>, %arg8: memref<128x256xf32, #tpu.memory_space<vmem>>) attributes {dimension_semantics = [#tpu.dimension_semantics<parallel>, #tpu.dimension_semantics<arbitrary>], iteration_bounds = array<i64: 1, 2>, scalar_prefetch = 0 : i64, scratch_operands = 1 : i64, tpu.core_type = #tpu.core_type<tc>, window_params = [{transform_indices = @transform_0, window_bounds = array<i64: 128, 256>}, {transform_indices = @transform_1, window_bounds = array<i64: 256, 512>}, {transform_indices = @transform_2, window_bounds = array<i64: 1, 512>}, {transform_indices = @transform_3, window_bounds = array<i64: 512, 256>}, {pipeline_mode = #tpu.pipeline_mode<synchronous>, transform_indices = @transform_4, window_bounds = array<i64: 1, 256>}, {transform_indices = @transform_5, window_bounds = array<i64: 128, 256>}]} {
    %c0_i32 = arith.constant 0 : i32
    %0 = arith.cmpi eq, %arg1, %c0_i32 : i32
    %1 = arith.extui %0 : i1 to i32
    %c0_i32_0 = arith.constant 0 : i32
    %2 = arith.cmpi ne, %1, %c0_i32_0 : i32
    scf.if %2 {
      %cst_15 = arith.constant 0.000000e+00 : f32
      %20 = vector.broadcast %cst_15 : f32 to vector<128x256xf32>
      %c0_16 = arith.constant 0 : index
      %c0_17 = arith.constant 0 : index
      %21 = vector.load %arg8[%c0_16, %c0_17] : memref<128x256xf32, #tpu.memory_space<vmem>>, vector<128x256xf32>
      tpu.vector_store %arg8[%c0_16, %c0_17], %20 {strides = array<i32>} : memref<128x256xf32, #tpu.memory_space<vmem>>, vector<128x256xf32>,
    } else {
    }
    %c0 = arith.constant 0 : index
    %c0_1 = arith.constant 0 : index
    %3 = vector.load %arg2[%c0, %c0_1] : memref<128x256xbf16, #tpu.memory_space<vmem>>, vector<128x256xbf16>
    %c0_2 = arith.constant 0 : index
    %c0_3 = arith.constant 0 : index
    %4 = vector.load %arg3[%c0_2, %c0_3] : memref<256x512xbf16, #tpu.memory_space<vmem>>, vector<256x512xbf16>
    %cst = arith.constant dense<0.000000e+00> : vector<128x512xf32>
    %5 = tpu.matmul %3, %4, %cst {dimension_numbers = #tpu.dot_dimension_numbers<[1], [0], [0], [1], [0, 0, 1, 1], [], []>} : vector<128x256xbf16>, vector<256x512xbf16>, vector<128x512xf32> -> vector<128x512xf32>
    %c0_4 = arith.constant 0 : index
    %c0_5 = arith.constant 0 : index
    %6 = vector.load %arg4[%c0_4, %c0_5] : memref<1x512xf32, #tpu.memory_space<vmem>>, vector<1x512xf32>
    %7 = vector.broadcast %6 : vector<1x512xf32> to vector<128x512xf32>
    %8 = arith.addf %5, %7 : vector<128x512xf32>
    %cst_6 = arith.constant 0.000000e+00 : f32
    %9 = vector.broadcast %cst_6 : f32 to vector<128x512xf32>
    %10 = arith.maximumf %8, %9 : vector<128x512xf32>
    %c0_7 = arith.constant 0 : index
    %c0_8 = arith.constant 0 : index
    %11 = vector.load %arg8[%c0_7, %c0_8] : memref<128x256xf32, #tpu.memory_space<vmem>>, vector<128x256xf32>
    %12 = arith.truncf %10 : vector<128x512xf32> to vector<128x512xbf16>
    %c0_9 = arith.constant 0 : index
    %c0_10 = arith.constant 0 : index
    %13 = vector.load %arg5[%c0_9, %c0_10] : memref<512x256xbf16, #tpu.memory_space<vmem>>, vector<512x256xbf16>
    %cst_11 = arith.constant dense<0.000000e+00> : vector<128x256xf32>
    %14 = tpu.matmul %12, %13, %cst_11 {dimension_numbers = #tpu.dot_dimension_numbers<[1], [0], [0], [1], [0, 0, 1, 1], [], []>} : vector<128x512xbf16>, vector<512x256xbf16>, vector<128x256xf32> -> vector<128x256xf32>
    %15 = arith.addf %11, %14 : vector<128x256xf32>
    %c0_12 = arith.constant 0 : index
    %c0_13 = arith.constant 0 : index
    %16 = vector.load %arg8[%c0_12, %c0_13] : memref<128x256xf32, #tpu.memory_space<vmem>>, vector<128x256xf32>
    tpu.vector_store %arg8[%c0_12, %c0_13], %15 {strides = array<i32>} : memref<128x256xf32, #tpu.memory_space<vmem>>, vector<128x256xf32>,
    %c1_i32 = arith.constant 1 : i32
    %17 = arith.cmpi eq, %arg1, %c1_i32 : i32
    %18 = arith.extui %17 : i1 to i32
    %c0_i32_14 = arith.constant 0 : i32
    %19 = arith.cmpi ne, %18, %c0_i32_14 : i32
    scf.if %19 {
      %c0_15 = arith.constant 0 : index
      %c0_16 = arith.constant 0 : index
      %20 = vector.load %arg8[%c0_15, %c0_16] : memref<128x256xf32, #tpu.memory_space<vmem>>, vector<128x256xf32>
      %c0_17 = arith.constant 0 : index
      %c0_18 = arith.constant 0 : index
      %21 = vector.load %arg6[%c0_17, %c0_18] : memref<1x256xf32, #tpu.memory_space<vmem>>, vector<1x256xf32>
      %22 = vector.broadcast %21 : vector<1x256xf32> to vector<128x256xf32>
      %23 = arith.addf %20, %22 : vector<128x256xf32>
      %c0_19 = arith.constant 0 : index
      %c0_20 = arith.constant 0 : index
      %24 = vector.load %arg7[%c0_19, %c0_20] : memref<128x256xf32, #tpu.memory_space<vmem>>, vector<128x256xf32>
      tpu.vector_store %arg7[%c0_19, %c0_20], %23 {strides = array<i32>} : memref<128x256xf32, #tpu.memory_space<vmem>>, vector<128x256xf32>,
    } else {
    }
    return
  }
  func.func @transform_0(%arg0: i32, %arg1: i32) -> (i32, i32) {
    %c0_i32 = arith.constant 0 : i32
    %c0_i32_0 = arith.constant 0 : i32
    return %arg0, %c0_i32 : i32, i32
  }
  func.func @transform_1(%arg0: i32, %arg1: i32) -> (i32, i32) {
    %c0_i32 = arith.constant 0 : i32
    %c0_i32_0 = arith.constant 0 : i32
    return %c0_i32, %arg1 : i32, i32
  }
  func.func @transform_2(%arg0: i32, %arg1: i32) -> (i32, i32) {
    %c0_i32 = arith.constant 0 : i32
    %c0_i32_0 = arith.constant 0 : i32
    return %c0_i32, %arg1 : i32, i32
  }
  func.func @transform_3(%arg0: i32, %arg1: i32) -> (i32, i32) {
    %c0_i32 = arith.constant 0 : i32
    %c0_i32_0 = arith.constant 0 : i32
    return %arg1, %c0_i32 : i32, i32
  }
  func.func @transform_4(%arg0: i32, %arg1: i32) -> (i32, i32) {
    %c0_i32 = arith.constant 0 : i32
    %c0_i32_0 = arith.constant 0 : i32
    %c0_i32_1 = arith.constant 0 : i32
    return %c0_i32, %c0_i32_0 : i32, i32
  }
  func.func @transform_5(%arg0: i32, %arg1: i32) -> (i32, i32) {
    %c0_i32 = arith.constant 0 : i32
    %c0_i32_0 = arith.constant 0 : i32
    return %arg0, %c0_i32 : i32, i32
  }
}

</mosaic_0001>

<llo_original>
// kernel: ffw_forward.1
$region0: #{ffw_forward.1}
  #allocation0 [shape = 'u32[]', space=smem, size = 0x4, offset = 0x4, fixed_abs, tag = 'smem constant byte address 0x4 - core index']
  #allocation1 [shape = 'u32[144,128]{1,0:T(1,128)}', space=vmem, size = 0x12000, scoped, tag = 'internal scratch']
  #allocation2 [shape = 'f32[128,256]{1,0:T(8,128)}', space=vmem, size = 0x20000, scoped, tag = 'scratch operand']
  %s0 = inlined_call_operand.vmem [shape: bf16[128,256], index: 0, kind: input, shape index: {}]
  %s1 = inlined_call_operand.vmem [shape: bf16[256,1024], index: 1, kind: input, shape index: {}]
  %s2 = inlined_call_operand.vmem [shape: f32[1,1024], index: 2, kind: input, shape index: {}]
  %s3 = inlined_call_operand.vmem [shape: bf16[1024,256], index: 3, kind: input, shape index: {}]
  %s4 = inlined_call_operand.vmem [shape: f32[1,256], index: 4, kind: input, shape index: {}]
  %s5 = inlined_call_operand.hbm [shape: f32[128,256], index: 5, kind: output, shape index: {}]
  %s6 = sld [smem:[#allocation0]]
  $region84: #{ffw_forward.1} parent=0
    _
  %s8 = ssub.s32 1, %s6
  %s9 = scalar_select 0, %s8, %s6
  $region1: #{ffw_forward.1} parent=0
    #allocation3 [shape = 'u8[524288]{0}', space=vmem, size = 0x80000, scoped, tag = 'input window, operand 1']
    #allocation4 [shape = 'u8[131072]{0}', space=vmem, size = 0x20000, scoped, tag = 'output window, operand 0, single buffered']
    #allocation5 [shape = 's32[2]{0}', space=sflag, size = 0x8, scoped, tag = 'scoped memory for ffw_forward.1']
    %10 = vsyncpa [#allocation5], 0
    loop: start=0, step=1, limit=4
    $region2: #{ffw_forward.1} parent=1 // loop_pre_header
      _
    $region3: #{ffw_forward.1} parent=1 // loop_header
      %s12 = sphi 0, %s16
      %p13 = scmp.ge.s32.totalorder %s12, 4
      %s19 = sphi 0, %s31
      %s20 = sphi 0, %s27
      %s21 = sphi 0, %s19
      %s22 = sphi 0, %s20
      %s23 = sphi 0, %s21
      %s24 = sphi 0, %s22
      %s34 = sphi 0, %s36
      %s37 = sphi 0, %s34
      %s38 = sphi 0, %s37
      %s54 = sphi 0, %s38
      %s60 = sphi 0, %s62
      %s63 = sphi 0, %s60
      %s64 = sphi 0, %s63
      %s80 = sphi 0, %s64
      %s86 = sphi 0, %s88
      %s89 = sphi 0, %s86
      %s90 = sphi 0, %s89
      %s106 = sphi 0, %s90
      %s112 = sphi 0, %s114
      %s115 = sphi 0, %s112
      %s116 = sphi 0, %s115
      %s132 = sphi 0, %s116
      %s136 = sphi 0, %s136
      %s138 = sphi 0, %s136
      %s139 = sphi 0, %s138
      %s153 = sphi 0, %s139
      %s159 = sphi 0, %s161
      %s162 = sphi 0, %s159
      %s163 = sphi 0, %s162
      %s179 = sphi 0, %s163
    $region4: #{ffw_forward.1} parent=1 // loop_header_branch
      %15 = sbr.rel (%p13) target = $region8
    $region5: #{ffw_forward.1} parent=1 // loop_body
      %s17 = ssub.s32 %s12, 1
      %s18 = ssub.s32 %s12, 2
      %s25 = sadd.s32 1, %s20
      %p26 = scmp.ge.s32.totalorder %s25, 2
      %s27 = scalar_select %p26, 0, %s25
      %s28 = sadd.s32 1, %s19
      %s29 = scalar_select %p26, %s28, %s19
      %p30 = scmp.ge.s32.totalorder %s29, 1
      %s31 = scalar_select %p30, 0, %s29
      %s32 = ssub.s32 %s19, %s31
      %p33 = scmp.eq.s32.totalorder %s32, 0
      %s35 = sadd.s32 %s34, 1
      %s36 = scalar_select %p33, %s34, %s35
      %p39 = pneg %p33
      %p40 = scmp.eq.s32.totalorder %s12, 1
      %p41 = por %p39, %p40
      %p42 = scmp.ne.s32.totalorder %s34, %s37
      %p43 = scmp.eq.s32.totalorder %s12, 0
      %p44 = por %p42, %p43
      %p45 = scmp.ne.s32.totalorder %s34, %s37
      %p46 = scmp.eq.s32.totalorder %s17, 1
      %p47 = por %p45, %p46
      %p48 = scmp.ne.s32.totalorder %s37, %s38
      %p49 = scmp.eq.s32.totalorder %s17, 0
      %p50 = por %p48, %p49
      %p51 = scmp.ne.s32.totalorder %s37, %s38
      %p52 = scmp.eq.s32.totalorder %s18, 1
      %p53 = por %p51, %p52
      %p55 = scmp.ne.s32.totalorder %s38, %s54
      %p56 = scmp.eq.s32.totalorder %s18, 0
      %p57 = por %p55, %p56
      %s58 = ssub.s32 %s20, %s27
      %p59 = scmp.eq.s32.totalorder %s58, 0
      %s61 = sadd.s32 %s60, 1
      %s62 = scalar_select %p59, %s60, %s61
      %p65 = pneg %p59
      %p66 = scmp.eq.s32.totalorder %s12, 1
      %p67 = por %p65, %p66
      %p68 = scmp.ne.s32.totalorder %s60, %s63
      %p69 = scmp.eq.s32.totalorder %s12, 0
      %p70 = por %p68, %p69
      %p71 = scmp.ne.s32.totalorder %s60, %s63
      %p72 = scmp.eq.s32.totalorder %s17, 1
      %p73 = por %p71, %p72
      %p74 = scmp.ne.s32.totalorder %s63, %s64
      %p75 = scmp.eq.s32.totalorder %s17, 0
      %p76 = por %p74, %p75
      %p77 = scmp.ne.s32.totalorder %s63, %s64
      %p78 = scmp.eq.s32.totalorder %s18, 1
      %p79 = por %p77, %p78
      %p81 = scmp.ne.s32.totalorder %s64, %s80
      %p82 = scmp.eq.s32.totalorder %s18, 0
      %p83 = por %p81, %p82
      %s84 = ssub.s32 %s20, %s27
      %p85 = scmp.eq.s32.totalorder %s84, 0
      %s87 = sadd.s32 %s86, 1
      %s88 = scalar_select %p85, %s86, %s87
      %p91 = pneg %p85
      %p92 = scmp.eq.s32.totalorder %s12, 1
      %p93 = por %p91, %p92
      %p94 = scmp.ne.s32.totalorder %s86, %s89
      %p95 = scmp.eq.s32.totalorder %s12, 0
      %p96 = por %p94, %p95
      %p97 = scmp.ne.s32.totalorder %s86, %s89
      %p98 = scmp.eq.s32.totalorder %s17, 1
      %p99 = por %p97, %p98
      %p100 = scmp.ne.s32.totalorder %s89, %s90
      %p101 = scmp.eq.s32.totalorder %s17, 0
      %p102 = por %p100, %p101
      %p103 = scmp.ne.s32.totalorder %s89, %s90
      %p104 = scmp.eq.s32.totalorder %s18, 1
      %p105 = por %p103, %p104
      %p107 = scmp.ne.s32.totalorder %s90, %s106
      %p108 = scmp.eq.s32.totalorder %s18, 0
      %p109 = por %p107, %p108
      %s110 = ssub.s32 %s20, %s27
      %p111 = scmp.eq.s32.totalorder %s110, 0
      %s113 = sadd.s32 %s112, 1
      %s114 = scalar_select %p111, %s112, %s113
      %p117 = pneg %p111
      %p118 = scmp.eq.s32.totalorder %s12, 1
      %p119 = por %p117, %p118
      %p120 = scmp.ne.s32.totalorder %s112, %s115
      %p121 = scmp.eq.s32.totalorder %s12, 0
      %p122 = por %p120, %p121
      %p123 = scmp.ne.s32.totalorder %s112, %s115
      %p124 = scmp.eq.s32.totalorder %s17, 1
      %p125 = por %p123, %p124
      %p126 = scmp.ne.s32.totalorder %s115, %s116
      %p127 = scmp.eq.s32.totalorder %s17, 0
      %p128 = por %p126, %p127
      %p129 = scmp.ne.s32.totalorder %s115, %s116
      %p130 = scmp.eq.s32.totalorder %s18, 1
      %p131 = por %p129, %p130
      %p133 = scmp.ne.s32.totalorder %s116, %s132
      %p134 = scmp.eq.s32.totalorder %s18, 0
      %p135 = por %p133, %p134
      %s137 = sadd.s32 %s136, 1
      %p140 = scmp.eq.s32.totalorder %s12, 1
      %p141 = scmp.ne.s32.totalorder %s136, %s138
      %p142 = scmp.eq.s32.totalorder %s12, 0
      %p143 = por %p141, %p142
      %p144 = scmp.ne.s32.totalorder %s136, %s138
      %p145 = scmp.eq.s32.totalorder %s17, 1
      %p146 = por %p144, %p145
      %p147 = scmp.ne.s32.totalorder %s138, %s139
      %p148 = scmp.eq.s32.totalorder %s17, 0
      %p149 = por %p147, %p148
      %p150 = scmp.ne.s32.totalorder %s138, %s139
      %p151 = scmp.eq.s32.totalorder %s18, 1
      %p152 = por %p150, %p151
      %p154 = scmp.ne.s32.totalorder %s139, %s153
      %p155 = scmp.eq.s32.totalorder %s18, 0
      %p156 = por %p154, %p155
      %s157 = ssub.s32 %s19, %s31
      %p158 = scmp.eq.s32.totalorder %s157, 0
      %s160 = sadd.s32 %s159, 1
      %s161 = scalar_select %p158, %s159, %s160
      %p164 = pneg %p158
      %p165 = scmp.eq.s32.totalorder %s12, 1
      %p166 = por %p164, %p165
      %p167 = scmp.ne.s32.totalorder %s159, %s162
      %p168 = scmp.eq.s32.totalorder %s12, 0
      %p169 = por %p167, %p168
      %p170 = scmp.ne.s32.totalorder %s159, %s162
      %p171 = scmp.eq.s32.totalorder %s17, 1
      %p172 = por %p170, %p171
      %p173 = scmp.ne.s32.totalorder %s162, %s163
      %p174 = scmp.eq.s32.totalorder %s17, 0
      %p175 = por %p173, %p174
      %p176 = scmp.ne.s32.totalorder %s162, %s163
      %p177 = scmp.eq.s32.totalorder %s18, 1
      %p178 = por %p176, %p177
      %p180 = scmp.ne.s32.totalorder %s163, %s179
      %p181 = scmp.eq.s32.totalorder %s18, 0
      %p182 = por %p180, %p181
      %p183 = scmp.le.s32.totalorder 1, %s12
      %p184 = scmp.lt.s32.totalorder %s12, 3
      %p185 = pnand %p183, %p184
      %p186 = pneg %p185
      // Predicated region
      $region9: #{ffw_forward.1} parent=5 // pred_check
        _
      $region10: #{ffw_forward.1} parent=5 // pred_check_branch
        %188 = sbr.rel (%p185) target = $region12
      $region11: #{ffw_forward.1} parent=5 // pred_region
        %s189 = ssub.s32 %s12, 1
        // Predicated region
        $region13: #{ffw_forward.1} parent=11 // pred_check
          %p190 = pneg %p50
        $region14: #{ffw_forward.1} parent=11 // pred_check_branch
          %192 = sbr.rel (%p190) target = $region16
        $region15: #{ffw_forward.1} parent=11 // pred_region
          %s193 = smul.u32 16, %s21
          %p194 = scmp.lt.s32.totalorder %s193, 15
          %s195 = scalar_select %p194, %s193, 15
          %s196 = smul.addr %s195, 2
          %s197 = smul.addr %s196, 4
          %s198 = scalar_lea.vmem %s0, %s197
          %s199 = smul.u32 16, %s21
        $region16: #{ffw_forward.1} parent=11 // pred_fallthru
          _
        // Predicated region
        $region17: #{ffw_forward.1} parent=11 // pred_check
          %p200 = pneg %p149
        $region18: #{ffw_forward.1} parent=11 // pred_check_branch
          %202 = sbr.rel (%p200) target = $region20
        $region19: #{ffw_forward.1} parent=11 // pred_region
          _
        $region20: #{ffw_forward.1} parent=11 // pred_fallthru
          _
      $region12: #{ffw_forward.1} parent=5 // pred_fallthru
        _
      %p203 = scmp.lt.s32.totalorder %s12, 2
      // Predicated region
      $region21: #{ffw_forward.1} parent=5 // pred_check
        %p204 = pneg %p203
      $region22: #{ffw_forward.1} parent=5 // pred_check_branch
        %206 = sbr.rel (%p204) target = $region24
      $region23: #{ffw_forward.1} parent=5 // pred_region
        // Predicated region
        $region25: #{ffw_forward.1} parent=23 // pred_check
          %p207 = pneg %p70
        $region26: #{ffw_forward.1} parent=23 // pred_check_branch
          %209 = sbr.rel (%p207) target = $region28
        $region27: #{ffw_forward.1} parent=23 // pred_region
          %s210 = sand.u32 %s60, 1
          %s211 = sand.u32 %s60, 1
          %s212 = smul.addr %s211, 512
          %s213 = scalar_lea.vmem [#allocation3], %s212
          %s214 = smul.u32 4, %s20
          %s215 = smul.addr %s214, 4
          %s216 = scalar_lea.vmem %s1, %s215
          // Predicated region
          $region29: #{ffw_forward.1} parent=27 // pred_check
            _
          $region30: #{ffw_forward.1} parent=27 // pred_check_branch
            %218 = sbr.rel (0) target = $region32
          $region31: #{ffw_forward.1} parent=27 // pred_region
            // Predicated region
            $region33: #{ffw_forward.1} parent=31 // pred_check
              _
            $region34: #{ffw_forward.1} parent=31 // pred_check_branch
              %220 = sbr.rel (0) target = $region36
            $region35: #{ffw_forward.1} parent=31 // pred_region
              loop: start=0, step=1, limit=1
              $region37: #{ffw_forward.1} parent=35 // loop_pre_header
                _
              $region38: #{ffw_forward.1} parent=35 // loop_header
                %s222 = sphi 0, %s226
                %p223 = scmp.ge.s32.totalorder %s222, 1
                %s227 = sphi %s216, %s216
                %s228 = sphi %s213, %s213
              $region39: #{ffw_forward.1} parent=35 // loop_header_branch
                %225 = sbr.rel (%p223) target = $region43
              $region40: #{ffw_forward.1} parent=35 // loop_body
                %v229 = vld [vmem:[%s227] sm:$0xff]
                %230 = vst [vmem:[%s228] sm:$0xff] %v229
                %v231 = vld [vmem:[%s227 + $0x8] sm:$0xff]
                %232 = vst [vmem:[%s228 + $0x8] sm:$0xff] %v231
                %v233 = vld [vmem:[%s227 + $0x20] sm:$0xff]
                %234 = vst [vmem:[%s228 + $0x10] sm:$0xff] %v233
                %v235 = vld [vmem:[%s227 + $0x28] sm:$0xff]
                %236 = vst [vmem:[%s228 + $0x18] sm:$0xff] %v235
                %v237 = vld [vmem:[%s227 + $0x40] sm:$0xff]
                %238 = vst [vmem:[%s228 + $0x20] sm:$0xff] %v237
                %v239 = vld [vmem:[%s227 + $0x48] sm:$0xff]
                %240 = vst [vmem:[%s228 + $0x28] sm:$0xff] %v239
                %v241 = vld [vmem:[%s227 + $0x60] sm:$0xff]
                %242 = vst [vmem:[%s228 + $0x30] sm:$0xff] %v241
                %v243 = vld [vmem:[%s227 + $0x68] sm:$0xff]
                %244 = vst [vmem:[%s228 + $0x38] sm:$0xff] %v243
                %v245 = vld [vmem:[%s227 + $0x80] sm:$0xff]
                %246 = vst [vmem:[%s228 + $0x40] sm:$0xff] %v245
                %v247 = vld [vmem:[%s227 + $0x88] sm:$0xff]
                %248 = vst [vmem:[%s228 + $0x48] sm:$0xff] %v247
                %v249 = vld [vmem:[%s227 + $0xa0] sm:$0xff]
                %250 = vst [vmem:[%s228 + $0x50] sm:$0xff] %v249
                %v251 = vld [vmem:[%s227 + $0xa8] sm:$0xff]
                %252 = vst [vmem:[%s228 + $0x58] sm:$0xff] %v251
                %v253 = vld [vmem:[%s227 + $0xc0] sm:$0xff]
                %254 = vst [vmem:[%s228 + $0x60] sm:$0xff] %v253
                %v255 = vld [vmem:[%s227 + $0xc8] sm:$0xff]
                %256 = vst [vmem:[%s228 + $0x68] sm:$0xff] %v255
                %v257 = vld [vmem:[%s227 + $0xe0] sm:$0xff]
                %258 = vst [vmem:[%s228 + $0x70] sm:$0xff] %v257
                %v259 = vld [vmem:[%s227 + $0xe8] sm:$0xff]
                %260 = vst [vmem:[%s228 + $0x78] sm:$0xff] %v259
                %v261 = vld [vmem:[%s227 + $0x100] sm:$0xff]
                %262 = vst [vmem:[%s228 + $0x80] sm:$0xff] %v261
                %v263 = vld [vmem:[%s227 + $0x108] sm:$0xff]
                %264 = vst [vmem:[%s228 + $0x88] sm:$0xff] %v263
                %v265 = vld [vmem:[%s227 + $0x120] sm:$0xff]
                %266 = vst [vmem:[%s228 + $0x90] sm:$0xff] %v265
                %v267 = vld [vmem:[%s227 + $0x128] sm:$0xff]
                %268 = vst [vmem:[%s228 + $0x98] sm:$0xff] %v267
                %v269 = vld [vmem:[%s227 + $0x140] sm:$0xff]
                %270 = vst [vmem:[%s228 + $0xa0] sm:$0xff] %v269
                %v271 = vld [vmem:[%s227 + $0x148] sm:$0xff]
                %272 = vst [vmem:[%s228 + $0xa8] sm:$0xff] %v271
                %v273 = vld [vmem:[%s227 + $0x160] sm:$0xff]
                %274 = vst [vmem:[%s228 + $0xb0] sm:$0xff] %v273
                %v275 = vld [vmem:[%s227 + $0x168] sm:$0xff]
                %276 = vst [vmem:[%s228 + $0xb8] sm:$0xff] %v275
                %v277 = vld [vmem:[%s227 + $0x180] sm:$0xff]
                %278 = vst [vmem:[%s228 + $0xc0] sm:$0xff] %v277
                %v279 = vld [vmem:[%s227 + $0x188] sm:$0xff]
                %280 = vst [vmem:[%s228 + $0xc8] sm:$0xff] %v279
                %v281 = vld [vmem:[%s227 + $0x1a0] sm:$0xff]
                %282 = vst [vmem:[%s228 + $0xd0] sm:$0xff] %v281
                %v283 = vld [vmem:[%s227 + $0x1a8] sm:$0xff]
                %284 = vst [vmem:[%s228 + $0xd8] sm:$0xff] %v283
                %v285 = vld [vmem:[%s227 + $0x1c0] sm:$0xff]
                %286 = vst [vmem:[%s228 + $0xe0] sm:$0xff] %v285
                %v287 = vld [vmem:[%s227 + $0x1c8] sm:$0xff]
                %288 = vst [vmem:[%s228 + $0xe8] sm:$0xff] %v287
                %v289 = vld [vmem:[%s227 + $0x1e0] sm:$0xff]
                %290 = vst [vmem:[%s228 + $0xf0] sm:$0xff] %v289
                %v291 = vld [vmem:[%s227 + $0x1e8] sm:$0xff]
                %292 = vst [vmem:[%s228 + $0xf8] sm:$0xff] %v291
                %v293 = vld [vmem:[%s227 + $0x200] sm:$0xff]
                %294 = vst [vmem:[%s228 + $0x100] sm:$0xff] %v293
                %v295 = vld [vmem:[%s227 + $0x208] sm:$0xff]
                %296 = vst [vmem:[%s228 + $0x108] sm:$0xff] %v295
                %v297 = vld [vmem:[%s227 + $0x220] sm:$0xff]
                %298 = vst [vmem:[%s228 + $0x110] sm:$0xff] %v297
                %v299 = vld [vmem:[%s227 + $0x228] sm:$0xff]
                %300 = vst [vmem:[%s228 + $0x118] sm:$0xff] %v299
                %v301 = vld [vmem:[%s227 + $0x240] sm:$0xff]
                %302 = vst [vmem:[%s228 + $0x120] sm:$0xff] %v301
                %v303 = vld [vmem:[%s227 + $0x248] sm:$0xff]
                %304 = vst [vmem:[%s228 + $0x128] sm:$0xff] %v303
                %v305 = vld [vmem:[%s227 + $0x260] sm:$0xff]
                %306 = vst [vmem:[%s228 + $0x130] sm:$0xff] %v305
                %v307 = vld [vmem:[%s227 + $0x268] sm:$0xff]
                %308 = vst [vmem:[%s228 + $0x138] sm:$0xff] %v307
                %v309 = vld [vmem:[%s227 + $0x280] sm:$0xff]
                %310 = vst [vmem:[%s228 + $0x140] sm:$0xff] %v309
                %v311 = vld [vmem:[%s227 + $0x288] sm:$0xff]
                %312 = vst [vmem:[%s228 + $0x148] sm:$0xff] %v311
                %v313 = vld [vmem:[%s227 + $0x2a0] sm:$0xff]
                %314 = vst [vmem:[%s228 + $0x150] sm:$0xff] %v313
                %v315 = vld [vmem:[%s227 + $0x2a8] sm:$0xff]
                %316 = vst [vmem:[%s228 + $0x158] sm:$0xff] %v315
                %v317 = vld [vmem:[%s227 + $0x2c0] sm:$0xff]
                %318 = vst [vmem:[%s228 + $0x160] sm:$0xff] %v317
                %v319 = vld [vmem:[%s227 + $0x2c8] sm:$0xff]
                %320 = vst [vmem:[%s228 + $0x168] sm:$0xff] %v319
                %v321 = vld [vmem:[%s227 + $0x2e0] sm:$0xff]
                %322 = vst [vmem:[%s228 + $0x170] sm:$0xff] %v321
                %v323 = vld [vmem:[%s227 + $0x2e8] sm:$0xff]
                %324 = vst [vmem:[%s228 + $0x178] sm:$0xff] %v323
                %v325 = vld [vmem:[%s227 + $0x300] sm:$0xff]
                %326 = vst [vmem:[%s228 + $0x180] sm:$0xff] %v325
                %v327 = vld [vmem:[%s227 + $0x308] sm:$0xff]
                %328 = vst [vmem:[%s228 + $0x188] sm:$0xff] %v327
                %v329 = vld [vmem:[%s227 + $0x320] sm:$0xff]
                %330 = vst [vmem:[%s228 + $0x190] sm:$0xff] %v329
                %v331 = vld [vmem:[%s227 + $0x328] sm:$0xff]
                %332 = vst [vmem:[%s228 + $0x198] sm:$0xff] %v331
                %v333 = vld [vmem:[%s227 + $0x340] sm:$0xff]
                %334 = vst [vmem:[%s228 + $0x1a0] sm:$0xff] %v333
                %v335 = vld [vmem:[%s227 + $0x348] sm:$0xff]
                %336 = vst [vmem:[%s228 + $0x1a8] sm:$0xff] %v335
                %v337 = vld [vmem:[%s227 + $0x360] sm:$0xff]
                %338 = vst [vmem:[%s228 + $0x1b0] sm:$0xff] %v337
                %v339 = vld [vmem:[%s227 + $0x368] sm:$0xff]
                %340 = vst [vmem:[%s228 + $0x1b8] sm:$0xff] %v339
                %v341 = vld [vmem:[%s227 + $0x380] sm:$0xff]
                %342 = vst [vmem:[%s228 + $0x1c0] sm:$0xff] %v341
                %v343 = vld [vmem:[%s227 + $0x388] sm:$0xff]
                %344 = vst [vmem:[%s228 + $0x1c8] sm:$0xff] %v343
                %v345 = vld [vmem:[%s227 + $0x3a0] sm:$0xff]
                %346 = vst [vmem:[%s228 + $0x1d0] sm:$0xff] %v345
                %v347 = vld [vmem:[%s227 + $0x3a8] sm:$0xff]
                %348 = vst [vmem:[%s228 + $0x1d8] sm:$0xff] %v347
                %v349 = vld [vmem:[%s227 + $0x3c0] sm:$0xff]
                %350 = vst [vmem:[%s228 + $0x1e0] sm:$0xff] %v349
                %v351 = vld [vmem:[%s227 + $0x3c8] sm:$0xff]
                %352 = vst [vmem:[%s228 + $0x1e8] sm:$0xff] %v351
                %v353 = vld [vmem:[%s227 + $0x3e0] sm:$0xff]
                %354 = vst [vmem:[%s228 + $0x1f0] sm:$0xff] %v353
                %v355 = vld [vmem:[%s227 + $0x3e8] sm:$0xff]
                %356 = vst [vmem:[%s228 + $0x1f8] sm:$0xff] %v355
              $region41: #{ffw_forward.1} parent=35 // loop_footer
                %s226 = sadd.s32 1, %s222
              $region42: #{ffw_forward.1} parent=35 // loop_footer_branch
                %221 = sbr.rel target = $region38
              $region43: #{ffw_forward.1} parent=35 // loop_exit
                _
            $region36: #{ffw_forward.1} parent=31 // pred_fallthru
              _
            // Predicated region
            $region44: #{ffw_forward.1} parent=31 // pred_check
              _
            $region45: #{ffw_forward.1} parent=31 // pred_check_branch
              %358 = sbr.rel target = $region47
            $region46: #{ffw_forward.1} parent=31 // pred_region
              _
            $region47: #{ffw_forward.1} parent=31 // pred_fallthru
              _
          $region32: #{ffw_forward.1} parent=27 // pred_fallthru
            _
          %359 = vnop
        $region28: #{ffw_forward.1} parent=23 // pred_fallthru
          _
        // Predicated region
        $region48: #{ffw_forward.1} parent=23 // pred_check
          %p360 = pneg %p96
        $region49: #{ffw_forward.1} parent=23 // pred_check_branch
          %362 = sbr.rel (%p360) target = $region51
        $region50: #{ffw_forward.1} parent=23 // pred_region
          %s363 = smul.u32 4, %s20
          %p364 = scmp.lt.s32.totalorder %s363, 7
          %s365 = scalar_select %p364, %s363, 7
          %s366 = scalar_lea.vmem %s2, %s365
          %s367 = smul.u32 4, %s20
        $region51: #{ffw_forward.1} parent=23 // pred_fallthru
          _
        // Predicated region
        $region52: #{ffw_forward.1} parent=23 // pred_check
          %p368 = pneg %p122
        $region53: #{ffw_forward.1} parent=23 // pred_check_branch
          %370 = sbr.rel (%p368) target = $region55
        $region54: #{ffw_forward.1} parent=23 // pred_region
          %s371 = smul.u32 64, %s20
          %p372 = scmp.lt.s32.totalorder %s371, 127
          %s373 = scalar_select %p372, %s371, 127
          %s374 = smul.addr %s373, 2
          %s375 = smul.addr %s374, 4
          %s376 = scalar_lea.vmem %s3, %s375
          %s377 = smul.u32 64, %s20
        $region55: #{ffw_forward.1} parent=23 // pred_fallthru
          _
      $region24: #{ffw_forward.1} parent=5 // pred_fallthru
        _
      %p378 = scmp.le.s32.totalorder 1, %s12
      %p379 = scmp.lt.s32.totalorder %s12, 3
      %p380 = pnand %p378, %p379
      %p381 = pneg %p380
      // Predicated region
      $region56: #{ffw_forward.1} parent=5 // pred_check
        _
      $region57: #{ffw_forward.1} parent=5 // pred_check_branch
        %383 = sbr.rel (%p380) target = $region59
      $region58: #{ffw_forward.1} parent=5 // pred_region
        %s384 = ssub.s32 %s12, 1
        %s385 = sand.u32 %s63, 1
        %s386 = sand.u32 %s63, 1
        %s387 = smul.addr %s386, 512
        %s388 = scalar_lea.vmem [#allocation3], %s387
        // Predicated region
        $region60: #{ffw_forward.1} parent=58 // pred_check
          %p389 = pneg %p76
        $region61: #{ffw_forward.1} parent=58 // pred_check_branch
          %391 = sbr.rel (%p389) target = $region63
        $region62: #{ffw_forward.1} parent=58 // pred_region
          _
        $region63: #{ffw_forward.1} parent=58 // pred_fallthru
          _
        %s392 = smul.u32 16, %s21
        %p393 = scmp.lt.s32.totalorder %s392, 15
        %s394 = scalar_select %p393, %s392, 15
        %s395 = smul.addr %s394, 2
        %s396 = smul.addr %s395, 4
        %s397 = scalar_lea.vmem %s0, %s396
        %p398 = pneg %p50
        %p399 = pneg %p47
        %s400 = sand.u32 %s63, 1
        %s401 = sand.u32 %s63, 1
        %s402 = smul.addr %s401, 512
        %s403 = scalar_lea.vmem [#allocation3], %s402
        %p404 = pneg %p76
        %p405 = pneg %p73
        %s406 = smul.u32 4, %s22
        %p407 = scmp.lt.s32.totalorder %s406, 7
        %s408 = scalar_select %p407, %s406, 7
        %s409 = scalar_lea.vmem %s2, %s408
        %p410 = pneg %p102
        %p411 = pneg %p99
        %s412 = smul.u32 64, %s22
        %p413 = scmp.lt.s32.totalorder %s412, 127
        %s414 = scalar_select %p413, %s412, 127
        %s415 = smul.addr %s414, 2
        %s416 = smul.addr %s415, 4
        %s417 = scalar_lea.vmem %s3, %s416
        %p418 = pneg %p128
        %p419 = pneg %p125
        %p420 = pneg %p149
        %p421 = pneg %p146
        %p422 = pneg %p175
        %p423 = pneg %p172
        %s424 = smul.u32 16, %s21
        %p425 = scmp.lt.s32.totalorder %s424, 15
        %s426 = scalar_select %p425, %s424, 15
        %s427 = smul.addr %s426, 2
        %s428 = smul.addr %s427, 4
        %s429 = scalar_lea.vmem %s0, %s428
        %s430 = smul.u32 16, %s21
        %s431 = smul.u32 4, %s22
        %s432 = smul.u32 4, %s22
        %p433 = scmp.lt.s32.totalorder %s432, 7
        %s434 = scalar_select %p433, %s432, 7
        %s435 = scalar_lea.vmem %s2, %s434
        %s436 = smul.u32 4, %s22
        %s437 = smul.u32 64, %s22
        %p438 = scmp.lt.s32.totalorder %s437, 127
        %s439 = scalar_select %p438, %s437, 127
        %s440 = smul.addr %s439, 2
        %s441 = smul.addr %s440, 4
        %s442 = scalar_lea.vmem %s3, %s441
        %s443 = smul.u32 64, %s22
        %s444 = smul.u32 16, %s21
        %p445 = scmp.eq.s32.totalorder %s22, 0
        // Predicated region
        $region64: #{ffw_forward.1} parent=58 // pred_check
          %p446 = pneg %p445
        $region65: #{ffw_forward.1} parent=58 // pred_check_branch
          %448 = sbr.rel (%p446) target = $region67
        $region66: #{ffw_forward.1} parent=58 // pred_region
          %449 = vst [vmem:[#allocation2] sm:$0xff] 0.0
          %450 = vst [vmem:[#allocation2 + $0x8] sm:$0xff] 0.0
          %451 = vst [vmem:[#allocation2 + $0x10] sm:$0xff] 0.0
          %452 = vst [vmem:[#allocation2 + $0x18] sm:$0xff] 0.0
          %453 = vst [vmem:[#allocation2 + $0x20] sm:$0xff] 0.0
          %454 = vst [vmem:[#allocation2 + $0x28] sm:$0xff] 0.0
          %455 = vst [vmem:[#allocation2 + $0x30] sm:$0xff] 0.0
          %456 = vst [vmem:[#allocation2 + $0x38] sm:$0xff] 0.0
          %457 = vst [vmem:[#allocation2 + $0x40] sm:$0xff] 0.0
          %458 = vst [vmem:[#allocation2 + $0x48] sm:$0xff] 0.0
          %459 = vst [vmem:[#allocation2 + $0x50] sm:$0xff] 0.0
          %460 = vst [vmem:[#allocation2 + $0x58] sm:$0xff] 0.0
          %461 = vst [vmem:[#allocation2 + $0x60] sm:$0xff] 0.0
          %462 = vst [vmem:[#allocation2 + $0x68] sm:$0xff] 0.0
          %463 = vst [vmem:[#allocation2 + $0x70] sm:$0xff] 0.0
          %464 = vst [vmem:[#allocation2 + $0x78] sm:$0xff] 0.0
          %465 = vst [vmem:[#allocation2 + $0x80] sm:$0xff] 0.0
          %466 = vst [vmem:[#allocation2 + $0x88] sm:$0xff] 0.0
          %467 = vst [vmem:[#allocation2 + $0x90] sm:$0xff] 0.0
          %468 = vst [vmem:[#allocation2 + $0x98] sm:$0xff] 0.0
          %469 = vst [vmem:[#allocation2 + $0xa0] sm:$0xff] 0.0
          %470 = vst [vmem:[#allocation2 + $0xa8] sm:$0xff] 0.0
          %471 = vst [vmem:[#allocation2 + $0xb0] sm:$0xff] 0.0
          %472 = vst [vmem:[#allocation2 + $0xb8] sm:$0xff] 0.0
          %473 = vst [vmem:[#allocation2 + $0xc0] sm:$0xff] 0.0
          %474 = vst [vmem:[#allocation2 + $0xc8] sm:$0xff] 0.0
          %475 = vst [vmem:[#allocation2 + $0xd0] sm:$0xff] 0.0
          %476 = vst [vmem:[#allocation2 + $0xd8] sm:$0xff] 0.0
          %477 = vst [vmem:[#allocation2 + $0xe0] sm:$0xff] 0.0
          %478 = vst [vmem:[#allocation2 + $0xe8] sm:$0xff] 0.0
          %479 = vst [vmem:[#allocation2 + $0xf0] sm:$0xff] 0.0
          %480 = vst [vmem:[#allocation2 + $0xf8] sm:$0xff] 0.0
        $region67: #{ffw_forward.1} parent=58 // pred_fallthru
          _
        %v481 = vld [vmem:[%s429] sm:$0xff]
        %v482 = vld [vmem:[%s429 + $0x8] sm:$0xff]
        %v483 = vld [vmem:[%s429 + $0x10] sm:$0xff]
        %v484 = vld [vmem:[%s429 + $0x18] sm:$0xff]
        %v485 = vld [vmem:[%s429 + $0x20] sm:$0xff]
        %v486 = vld [vmem:[%s429 + $0x28] sm:$0xff]
        %v487 = vld [vmem:[%s429 + $0x30] sm:$0xff]
        %v488 = vld [vmem:[%s429 + $0x38] sm:$0xff]
        %v489 = vld [vmem:[%s429 + $0x40] sm:$0xff]
        %v490 = vld [vmem:[%s429 + $0x48] sm:$0xff]
        %v491 = vld [vmem:[%s429 + $0x50] sm:$0xff]
        %v492 = vld [vmem:[%s429 + $0x58] sm:$0xff]
        %v493 = vld [vmem:[%s429 + $0x60] sm:$0xff]
        %v494 = vld [vmem:[%s429 + $0x68] sm:$0xff]
        %v495 = vld [vmem:[%s429 + $0x70] sm:$0xff]
        %v496 = vld [vmem:[%s429 + $0x78] sm:$0xff]
        %v497 = vld [vmem:[%s388] sm:$0xff]
        %v498 = vld [vmem:[%s388 + $0x8] sm:$0xff]
        %v499 = vld [vmem:[%s388 + $0x10] sm:$0xff]
        %v500 = vld [vmem:[%s388 + $0x18] sm:$0xff]
        %v501 = vld [vmem:[%s388 + $0x20] sm:$0xff]
        %v502 = vld [vmem:[%s388 + $0x28] sm:$0xff]
        %v503 = vld [vmem:[%s388 + $0x30] sm:$0xff]
        %v504 = vld [vmem:[%s388 + $0x38] sm:$0xff]
        %v505 = vld [vmem:[%s388 + $0x40] sm:$0xff]
        %v506 = vld [vmem:[%s388 + $0x48] sm:$0xff]
        %v507 = vld [vmem:[%s388 + $0x50] sm:$0xff]
        %v508 = vld [vmem:[%s388 + $0x58] sm:$0xff]
        %v509 = vld [vmem:[%s388 + $0x60] sm:$0xff]
        %v510 = vld [vmem:[%s388 + $0x68] sm:$0xff]
        %v511 = vld [vmem:[%s388 + $0x70] sm:$0xff]
        %v512 = vld [vmem:[%s388 + $0x78] sm:$0xff]
        %v513 = vld [vmem:[%s388 + $0x80] sm:$0xff]
        %v514 = vld [vmem:[%s388 + $0x88] sm:$0xff]
        %v515 = vld [vmem:[%s388 + $0x90] sm:$0xff]
        %v516 = vld [vmem:[%s388 + $0x98] sm:$0xff]
        %v517 = vld [vmem:[%s388 + $0xa0] sm:$0xff]
        %v518 = vld [vmem:[%s388 + $0xa8] sm:$0xff]
        %v519 = vld [vmem:[%s388 + $0xb0] sm:$0xff]
        %v520 = vld [vmem:[%s388 + $0xb8] sm:$0xff]
        %v521 = vld [vmem:[%s388 + $0xc0] sm:$0xff]
        %v522 = vld [vmem:[%s388 + $0xc8] sm:$0xff]
        %v523 = vld [vmem:[%s388 + $0xd0] sm:$0xff]
        %v524 = vld [vmem:[%s388 + $0xd8] sm:$0xff]
        %v525 = vld [vmem:[%s388 + $0xe0] sm:$0xff]
        %v526 = vld [vmem:[%s388 + $0xe8] sm:$0xff]
        %v527 = vld [vmem:[%s388 + $0xf0] sm:$0xff]
        %v528 = vld [vmem:[%s388 + $0xf8] sm:$0xff]
        %v529 = vld [vmem:[%s388 + $0x100] sm:$0xff]
        %v530 = vld [vmem:[%s388 + $0x108] sm:$0xff]
        %v531 = vld [vmem:[%s388 + $0x110] sm:$0xff]
        %v532 = vld [vmem:[%s388 + $0x118] sm:$0xff]
        %v533 = vld [vmem:[%s388 + $0x120] sm:$0xff]
        %v534 = vld [vmem:[%s388 + $0x128] sm:$0xff]
        %v535 = vld [vmem:[%s388 + $0x130] sm:$0xff]
        %v536 = vld [vmem:[%s388 + $0x138] sm:$0xff]
        %v537 = vld [vmem:[%s388 + $0x140] sm:$0xff]
        %v538 = vld [vmem:[%s388 + $0x148] sm:$0xff]
        %v539 = vld [vmem:[%s388 + $0x150] sm:$0xff]
        %v540 = vld [vmem:[%s388 + $0x158] sm:$0xff]
        %v541 = vld [vmem:[%s388 + $0x160] sm:$0xff]
        %v542 = vld [vmem:[%s388 + $0x168] sm:$0xff]
        %v543 = vld [vmem:[%s388 + $0x170] sm:$0xff]
        %v544 = vld [vmem:[%s388 + $0x178] sm:$0xff]
        %v545 = vld [vmem:[%s388 + $0x180] sm:$0xff]
        %v546 = vld [vmem:[%s388 + $0x188] sm:$0xff]
        %v547 = vld [vmem:[%s388 + $0x190] sm:$0xff]
        %v548 = vld [vmem:[%s388 + $0x198] sm:$0xff]
        %v549 = vld [vmem:[%s388 + $0x1a0] sm:$0xff]
        %v550 = vld [vmem:[%s388 + $0x1a8] sm:$0xff]
        %v551 = vld [vmem:[%s388 + $0x1b0] sm:$0xff]
        %v552 = vld [vmem:[%s388 + $0x1b8] sm:$0xff]
        %v553 = vld [vmem:[%s388 + $0x1c0] sm:$0xff]
        %v554 = vld [vmem:[%s388 + $0x1c8] sm:$0xff]
        %v555 = vld [vmem:[%s388 + $0x1d0] sm:$0xff]
        %v556 = vld [vmem:[%s388 + $0x1d8] sm:$0xff]
        %v557 = vld [vmem:[%s388 + $0x1e0] sm:$0xff]
        %v558 = vld [vmem:[%s388 + $0x1e8] sm:$0xff]
        %v559 = vld [vmem:[%s388 + $0x1f0] sm:$0xff]
        %v560 = vld [vmem:[%s388 + $0x1f8] sm:$0xff]
        %v561 = vld [vmem:[%s435] sm:$0xf]
        %v563 = vlaneseq
        %v564 = vshrl.u32 %v563, 7
        %v565 = vsub.s32 0, %v564
        %v566 = vrot.slane %v561, %v565
        %v567 = vlaneseq
        %v568 = vshrl.u32 %v567, 7
        %v569 = vsub.s32 1, %v568
        %v570 = vrot.slane %v561, %v569
        %v571 = vlaneseq
        %v572 = vshrl.u32 %v571, 7
        %v573 = vsub.s32 2, %v572
        %v574 = vrot.slane %v561, %v573
        %v575 = vlaneseq
        %v576 = vshrl.u32 %v575, 7
        %v577 = vsub.s32 3, %v576
        %v578 = vrot.slane %v561, %v577
        %v599 = vunpack.c.l.b16 %v481
        %v600 = vunpack.c.h.b16 %v481
        %v601 = vunpack.c.l.b16 %v482
        %v602 = vunpack.c.h.b16 %v482
        %v603 = vunpack.c.l.b16 %v483
        %v604 = vunpack.c.h.b16 %v483
        %v605 = vunpack.c.l.b16 %v484
        %v606 = vunpack.c.h.b16 %v484
        %v607 = vunpack.c.l.b16 %v485
        %v608 = vunpack.c.h.b16 %v485
        %v609 = vunpack.c.l.b16 %v486
        %v610 = vunpack.c.h.b16 %v486
        %v611 = vunpack.c.l.b16 %v487
        %v612 = vunpack.c.h.b16 %v487
        %v613 = vunpack.c.l.b16 %v488
        %v614 = vunpack.c.h.b16 %v488
        %v615 = vunpack.c.l.b16 %v489
        %v616 = vunpack.c.h.b16 %v489
        %v617 = vunpack.c.l.b16 %v490
        %v618 = vunpack.c.h.b16 %v490
        %v619 = vunpack.c.l.b16 %v491
        %v620 = vunpack.c.h.b16 %v491
        %v621 = vunpack.c.l.b16 %v492
        %v622 = vunpack.c.h.b16 %v492
        %v623 = vunpack.c.l.b16 %v493
        %v624 = vunpack.c.h.b16 %v493
        %v625 = vunpack.c.l.b16 %v494
        %v626 = vunpack.c.h.b16 %v494
        %v627 = vunpack.c.l.b16 %v495
        %v628 = vunpack.c.h.b16 %v495
        %v629 = vunpack.c.l.b16 %v496
        %v630 = vunpack.c.h.b16 %v496
        %v631 = vpack.c.b16 %v601, %v599
        %v632 = vpack.c.b16 %v602, %v600
        %v633 = vpack.c.b16 %v605, %v603
        %v634 = vpack.c.b16 %v606, %v604
        %v635 = vpack.c.b16 %v609, %v607
        %v636 = vpack.c.b16 %v610, %v608
        %v637 = vpack.c.b16 %v613, %v611
        %v638 = vpack.c.b16 %v614, %v612
        %v639 = vpack.c.b16 %v617, %v615
        %v640 = vpack.c.b16 %v618, %v616
        %v641 = vpack.c.b16 %v621, %v619
        %v642 = vpack.c.b16 %v622, %v620
        %v643 = vpack.c.b16 %v625, %v623
        %v644 = vpack.c.b16 %v626, %v624
        %v645 = vpack.c.b16 %v629, %v627
        %v646 = vpack.c.b16 %v630, %v628
        %v727 = vunpack.c.l.b16 %v497
        %v728 = vunpack.c.h.b16 %v497
        %v729 = vunpack.c.l.b16 %v498
        %v730 = vunpack.c.h.b16 %v498
        %v731 = vunpack.c.l.b16 %v499
        %v732 = vunpack.c.h.b16 %v499
        %v733 = vunpack.c.l.b16 %v500
        %v734 = vunpack.c.h.b16 %v500
        %v735 = vunpack.c.l.b16 %v501
        %v736 = vunpack.c.h.b16 %v501
        %v737 = vunpack.c.l.b16 %v502
        %v738 = vunpack.c.h.b16 %v502
        %v739 = vunpack.c.l.b16 %v503
        %v740 = vunpack.c.h.b16 %v503
        %v741 = vunpack.c.l.b16 %v504
        %v742 = vunpack.c.h.b16 %v504
        %v743 = vunpack.c.l.b16 %v505
        %v744 = vunpack.c.h.b16 %v505
        %v745 = vunpack.c.l.b16 %v506
        %v746 = vunpack.c.h.b16 %v506
        %v747 = vunpack.c.l.b16 %v507
        %v748 = vunpack.c.h.b16 %v507
        %v749 = vunpack.c.l.b16 %v508
        %v750 = vunpack.c.h.b16 %v508
        %v751 = vunpack.c.l.b16 %v509
        %v752 = vunpack.c.h.b16 %v509
        %v753 = vunpack.c.l.b16 %v510
        %v754 = vunpack.c.h.b16 %v510
        %v755 = vunpack.c.l.b16 %v511
        %v756 = vunpack.c.h.b16 %v511
        %v757 = vunpack.c.l.b16 %v512
        %v758 = vunpack.c.h.b16 %v512
        %v759 = vunpack.c.l.b16 %v513
        %v760 = vunpack.c.h.b16 %v513
        %v761 = vunpack.c.l.b16 %v514
        %v762 = vunpack.c.h.b16 %v514
        %v763 = vunpack.c.l.b16 %v515
        %v764 = vunpack.c.h.b16 %v515
        %v765 = vunpack.c.l.b16 %v516
        %v766 = vunpack.c.h.b16 %v516
        %v767 = vunpack.c.l.b16 %v517
        %v768 = vunpack.c.h.b16 %v517
        %v769 = vunpack.c.l.b16 %v518
        %v770 = vunpack.c.h.b16 %v518
        %v771 = vunpack.c.l.b16 %v519
        %v772 = vunpack.c.h.b16 %v519
        %v773 = vunpack.c.l.b16 %v520
        %v774 = vunpack.c.h.b16 %v520
        %v775 = vunpack.c.l.b16 %v521
        %v776 = vunpack.c.h.b16 %v521
        %v777 = vunpack.c.l.b16 %v522
        %v778 = vunpack.c.h.b16 %v522
        %v779 = vunpack.c.l.b16 %v523
        %v780 = vunpack.c.h.b16 %v523
        %v781 = vunpack.c.l.b16 %v524
        %v782 = vunpack.c.h.b16 %v524
        %v783 = vunpack.c.l.b16 %v525
        %v784 = vunpack.c.h.b16 %v525
        %v785 = vunpack.c.l.b16 %v526
        %v786 = vunpack.c.h.b16 %v526
        %v787 = vunpack.c.l.b16 %v527
        %v788 = vunpack.c.h.b16 %v527
        %v789 = vunpack.c.l.b16 %v528
        %v790 = vunpack.c.h.b16 %v528
        %v791 = vunpack.c.l.b16 %v529
        %v792 = vunpack.c.h.b16 %v529
        %v793 = vunpack.c.l.b16 %v530
        %v794 = vunpack.c.h.b16 %v530
        %v795 = vunpack.c.l.b16 %v531
        %v796 = vunpack.c.h.b16 %v531
        %v797 = vunpack.c.l.b16 %v532
        %v798 = vunpack.c.h.b16 %v532
        %v799 = vunpack.c.l.b16 %v533
        %v800 = vunpack.c.h.b16 %v533
        %v801 = vunpack.c.l.b16 %v534
        %v802 = vunpack.c.h.b16 %v534
        %v803 = vunpack.c.l.b16 %v535
        %v804 = vunpack.c.h.b16 %v535
        %v805 = vunpack.c.l.b16 %v536
        %v806 = vunpack.c.h.b16 %v536
        %v807 = vunpack.c.l.b16 %v537
        %v808 = vunpack.c.h.b16 %v537
        %v809 = vunpack.c.l.b16 %v538
        %v810 = vunpack.c.h.b16 %v538
        %v811 = vunpack.c.l.b16 %v539
        %v812 = vunpack.c.h.b16 %v539
        %v813 = vunpack.c.l.b16 %v540
        %v814 = vunpack.c.h.b16 %v540
        %v815 = vunpack.c.l.b16 %v541
        %v816 = vunpack.c.h.b16 %v541
        %v817 = vunpack.c.l.b16 %v542
        %v818 = vunpack.c.h.b16 %v542
        %v819 = vunpack.c.l.b16 %v543
        %v820 = vunpack.c.h.b16 %v543
        %v821 = vunpack.c.l.b16 %v544
        %v822 = vunpack.c.h.b16 %v544
        %v823 = vunpack.c.l.b16 %v545
        %v824 = vunpack.c.h.b16 %v545
        %v825 = vunpack.c.l.b16 %v546
        %v826 = vunpack.c.h.b16 %v546
        %v827 = vunpack.c.l.b16 %v547
        %v828 = vunpack.c.h.b16 %v547
        %v829 = vunpack.c.l.b16 %v548
        %v830 = vunpack.c.h.b16 %v548
        %v831 = vunpack.c.l.b16 %v549
        %v832 = vunpack.c.h.b16 %v549
        %v833 = vunpack.c.l.b16 %v550
        %v834 = vunpack.c.h.b16 %v550
        %v835 = vunpack.c.l.b16 %v551
        %v836 = vunpack.c.h.b16 %v551
        %v837 = vunpack.c.l.b16 %v552
        %v838 = vunpack.c.h.b16 %v552
        %v839 = vunpack.c.l.b16 %v553
        %v840 = vunpack.c.h.b16 %v553
        %v841 = vunpack.c.l.b16 %v554
        %v842 = vunpack.c.h.b16 %v554
        %v843 = vunpack.c.l.b16 %v555
        %v844 = vunpack.c.h.b16 %v555
        %v845 = vunpack.c.l.b16 %v556
        %v846 = vunpack.c.h.b16 %v556
        %v847 = vunpack.c.l.b16 %v557
        %v848 = vunpack.c.h.b16 %v557
        %v849 = vunpack.c.l.b16 %v558
        %v850 = vunpack.c.h.b16 %v558
        %v851 = vunpack.c.l.b16 %v559
        %v852 = vunpack.c.h.b16 %v559
        %v853 = vunpack.c.l.b16 %v560
        %v854 = vunpack.c.h.b16 %v560
        %v855 = vpack.c.b16 %v731, %v727
        %v856 = vpack.c.b16 %v732, %v728
        %v857 = vpack.c.b16 %v733, %v729
        %v858 = vpack.c.b16 %v734, %v730
        %v859 = vpack.c.b16 %v739, %v735
        %v860 = vpack.c.b16 %v740, %v736
        %v861 = vpack.c.b16 %v741, %v737
        %v862 = vpack.c.b16 %v742, %v738
        %v863 = vpack.c.b16 %v747, %v743
        %v864 = vpack.c.b16 %v748, %v744
        %v865 = vpack.c.b16 %v749, %v745
        %v866 = vpack.c.b16 %v750, %v746
        %v867 = vpack.c.b16 %v755, %v751
        %v868 = vpack.c.b16 %v756, %v752
        %v869 = vpack.c.b16 %v757, %v753
        %v870 = vpack.c.b16 %v758, %v754
        %v871 = vpack.c.b16 %v763, %v759
        %v872 = vpack.c.b16 %v764, %v760
        %v873 = vpack.c.b16 %v765, %v761
        %v874 = vpack.c.b16 %v766, %v762
        %v875 = vpack.c.b16 %v771, %v767
        %v876 = vpack.c.b16 %v772, %v768
        %v877 = vpack.c.b16 %v773, %v769
        %v878 = vpack.c.b16 %v774, %v770
        %v879 = vpack.c.b16 %v779, %v775
        %v880 = vpack.c.b16 %v780, %v776
        %v881 = vpack.c.b16 %v781, %v777
        %v882 = vpack.c.b16 %v782, %v778
        %v883 = vpack.c.b16 %v787, %v783
        %v884 = vpack.c.b16 %v788, %v784
        %v885 = vpack.c.b16 %v789, %v785
        %v886 = vpack.c.b16 %v790, %v786
        %v887 = vpack.c.b16 %v795, %v791
        %v888 = vpack.c.b16 %v796, %v792
        %v889 = vpack.c.b16 %v797, %v793
        %v890 = vpack.c.b16 %v798, %v794
        %v891 = vpack.c.b16 %v803, %v799
        %v892 = vpack.c.b16 %v804, %v800
        %v893 = vpack.c.b16 %v805, %v801
        %v894 = vpack.c.b16 %v806, %v802
        %v895 = vpack.c.b16 %v811, %v807
        %v896 = vpack.c.b16 %v812, %v808
        %v897 = vpack.c.b16 %v813, %v809
        %v898 = vpack.c.b16 %v814, %v810
        %v899 = vpack.c.b16 %v819, %v815
        %v900 = vpack.c.b16 %v820, %v816
        %v901 = vpack.c.b16 %v821, %v817
        %v902 = vpack.c.b16 %v822, %v818
        %v903 = vpack.c.b16 %v827, %v823
        %v904 = vpack.c.b16 %v828, %v824
        %v905 = vpack.c.b16 %v829, %v825
        %v906 = vpack.c.b16 %v830, %v826
        %v907 = vpack.c.b16 %v835, %v831
        %v908 = vpack.c.b16 %v836, %v832
        %v909 = vpack.c.b16 %v837, %v833
        %v910 = vpack.c.b16 %v838, %v834
        %v911 = vpack.c.b16 %v843, %v839
        %v912 = vpack.c.b16 %v844, %v840
        %v913 = vpack.c.b16 %v845, %v841
        %v914 = vpack.c.b16 %v846, %v842
        %v915 = vpack.c.b16 %v851, %v847
        %v916 = vpack.c.b16 %v852, %v848
        %v917 = vpack.c.b16 %v853, %v849
        %v918 = vpack.c.b16 %v854, %v850
        %983 = vmatprep.subr.bf16.mxu0 %v856
        %984 = vmatpush1.bf16.msra.mxu0 %v855
        %985 = vmatprep.subr.bf16.mxu0 %v860
        %986 = vmatpush1.bf16.msra.mxu0 %v859
        %987 = vmatprep.subr.bf16.mxu0 %v864
        %988 = vmatpush1.bf16.msra.mxu0 %v863
        %989 = vmatprep.subr.bf16.mxu0 %v868
        %990 = vmatpush1.bf16.msra.mxu0 %v867
        %991 = vmatprep.subr.bf16.mxu0 %v872
        %992 = vmatpush1.bf16.msra.mxu0 %v871
        %993 = vmatprep.subr.bf16.mxu0 %v876
        %994 = vmatpush1.bf16.msra.mxu0 %v875
        %995 = vmatprep.subr.bf16.mxu0 %v880
        %996 = vmatpush1.bf16.msra.mxu0 %v879
        %997 = vmatprep.subr.bf16.mxu0 %v884
        %998 = vmatpush1.bf16.msra.mxu0 %v883
        %999 = vmatprep.subr.bf16.mxu0 %v888
        %1000 = vmatpush1.bf16.msra.mxu0 %v887
        %1001 = vmatprep.subr.bf16.mxu0 %v892
        %1002 = vmatpush1.bf16.msra.mxu0 %v891
        %1003 = vmatprep.subr.bf16.mxu0 %v896
        %1004 = vmatpush1.bf16.msra.mxu0 %v895
        %1005 = vmatprep.subr.bf16.mxu0 %v900
        %1006 = vmatpush1.bf16.msra.mxu0 %v899
        %1007 = vmatprep.subr.bf16.mxu0 %v904
        %1008 = vmatpush1.bf16.msra.mxu0 %v903
        %1009 = vmatprep.subr.bf16.mxu0 %v908
        %1010 = vmatpush1.bf16.msra.mxu0 %v907
        %1011 = vmatprep.subr.bf16.mxu0 %v912
        %1012 = vmatpush1.bf16.msra.mxu0 %v911
        %1013 = vmatprep.subr.bf16.mxu0 %v916
        %1014 = vmatpush1.bf16.msra.mxu0 %v915
        %1015 = vmatprep.mubr.bf16.mxu0 %v632
        %1016 = vmatmul.mubr.bf16.gmra.mrb[0].mxu0 %v631
        %v1017 = vpop.f32.mrb[0].mxu0
        %v1018 = vadd.f32 %v566, %v1017
        %v1019 = vpop.f32.mrb[0].mxu0
        %v1020 = vadd.f32 %v570, %v1019
        %v1021 = vpop.f32.mrb[0].mxu0
        %v1022 = vadd.f32 %v566, %v1021
        %v1023 = vpop.f32.mrb[0].mxu0
        %v1024 = vadd.f32 %v570, %v1023
        %1025 = vmatprep.mubr.bf16.mxu0 %v634
        %1026 = vmatmul.mubr.bf16.gmra.mrb[0].mxu0 %v633
        %v1027 = vpop.f32.mrb[0].mxu0
        %v1028 = vadd.f32 %v566, %v1027
        %v1029 = vpop.f32.mrb[0].mxu0
        %v1030 = vadd.f32 %v570, %v1029
        %v1031 = vpop.f32.mrb[0].mxu0
        %v1032 = vadd.f32 %v566, %v1031
        %v1033 = vpop.f32.mrb[0].mxu0
        %v1034 = vadd.f32 %v570, %v1033
        %1035 = vmatprep.mubr.bf16.mxu0 %v636
        %1036 = vmatmul.mubr.bf16.gmra.mrb[0].mxu0 %v635
        %v1037 = vpop.f32.mrb[0].mxu0
        %v1038 = vadd.f32 %v566, %v1037
        %v1039 = vpop.f32.mrb[0].mxu0
        %v1040 = vadd.f32 %v570, %v1039
        %v1041 = vpop.f32.mrb[0].mxu0
        %v1042 = vadd.f32 %v566, %v1041
        %v1043 = vpop.f32.mrb[0].mxu0
        %v1044 = vadd.f32 %v570, %v1043
        %1045 = vmatprep.mubr.bf16.mxu0 %v638
        %1046 = vmatmul.mubr.bf16.gmra.mrb[0].mxu0 %v637
        %v1047 = vpop.f32.mrb[0].mxu0
        %v1048 = vadd.f32 %v566, %v1047
        %v1049 = vpop.f32.mrb[0].mxu0
        %v1050 = vadd.f32 %v570, %v1049
        %v1051 = vpop.f32.mrb[0].mxu0
        %v1052 = vadd.f32 %v566, %v1051
        %v1053 = vpop.f32.mrb[0].mxu0
        %v1054 = vadd.f32 %v570, %v1053
        %1055 = vmatprep.mubr.bf16.mxu0 %v640
        %1056 = vmatmul.mubr.bf16.gmra.mrb[0].mxu0 %v639
        %v1057 = vpop.f32.mrb[0].mxu0
        %v1058 = vadd.f32 %v566, %v1057
        %v1059 = vpop.f32.mrb[0].mxu0
        %v1060 = vadd.f32 %v570, %v1059
        %v1061 = vpop.f32.mrb[0].mxu0
        %v1062 = vadd.f32 %v566, %v1061
        %v1063 = vpop.f32.mrb[0].mxu0
        %v1064 = vadd.f32 %v570, %v1063
        %1065 = vmatprep.mubr.bf16.mxu0 %v642
        %1066 = vmatmul.mubr.bf16.gmra.mrb[0].mxu0 %v641
        %v1067 = vpop.f32.mrb[0].mxu0
        %v1068 = vadd.f32 %v566, %v1067
        %v1069 = vpop.f32.mrb[0].mxu0
        %v1070 = vadd.f32 %v570, %v1069
        %v1071 = vpop.f32.mrb[0].mxu0
        %v1072 = vadd.f32 %v566, %v1071
        %v1073 = vpop.f32.mrb[0].mxu0
        %v1074 = vadd.f32 %v570, %v1073
        %1075 = vmatprep.mubr.bf16.mxu0 %v644
        %1076 = vmatmul.mubr.bf16.gmra.mrb[0].mxu0 %v643
        %v1077 = vpop.f32.mrb[0].mxu0
        %v1078 = vadd.f32 %v566, %v1077
        %v1079 = vpop.f32.mrb[0].mxu0
        %v1080 = vadd.f32 %v570, %v1079
        %v1081 = vpop.f32.mrb[0].mxu0
        %v1082 = vadd.f32 %v566, %v1081
        %v1083 = vpop.f32.mrb[0].mxu0
        %v1084 = vadd.f32 %v570, %v1083
        %1085 = vmatprep.mubr.bf16.mxu0 %v646
        %1086 = vmatmul.mubr.bf16.gmra.mrb[0].mxu0 %v645
        %v1087 = vpop.f32.mrb[0].mxu0
        %v1088 = vadd.f32 %v566, %v1087
        %v1089 = vpop.f32.mrb[0].mxu0
        %v1090 = vadd.f32 %v570, %v1089
        %v1091 = vpop.f32.mrb[0].mxu0
        %v1092 = vadd.f32 %v566, %v1091
        %v1093 = vpop.f32.mrb[0].mxu0
        %v1094 = vadd.f32 %v570, %v1093
        %1095 = vdwg.mxu0
        %1096 = vmatprep.subr.bf16.mxu0 %v858
        %1097 = vmatpush1.bf16.msra.mxu0 %v857
        %1098 = vmatprep.subr.bf16.mxu0 %v862
        %1099 = vmatpush1.bf16.msra.mxu0 %v861
        %1100 = vmatprep.subr.bf16.mxu0 %v866
        %1101 = vmatpush1.bf16.msra.mxu0 %v865
        %1102 = vmatprep.subr.bf16.mxu0 %v870
        %1103 = vmatpush1.bf16.msra.mxu0 %v869
        %1104 = vmatprep.subr.bf16.mxu0 %v874
        %1105 = vmatpush1.bf16.msra.mxu0 %v873
        %1106 = vmatprep.subr.bf16.mxu0 %v878
        %1107 = vmatpush1.bf16.msra.mxu0 %v877
        %1108 = vmatprep.subr.bf16.mxu0 %v882
        %1109 = vmatpush1.bf16.msra.mxu0 %v881
        %1110 = vmatprep.subr.bf16.mxu0 %v886
        %1111 = vmatpush1.bf16.msra.mxu0 %v885
        %1112 = vmatprep.subr.bf16.mxu0 %v890
        %1113 = vmatpush1.bf16.msra.mxu0 %v889
        %1114 = vmatprep.subr.bf16.mxu0 %v894
        %1115 = vmatpush1.bf16.msra.mxu0 %v893
        %1116 = vmatprep.subr.bf16.mxu0 %v898
        %1117 = vmatpush1.bf16.msra.mxu0 %v897
        %1118 = vmatprep.subr.bf16.mxu0 %v902
        %1119 = vmatpush1.bf16.msra.mxu0 %v901
        %1120 = vmatprep.subr.bf16.mxu0 %v906
        %1121 = vmatpush1.bf16.msra.mxu0 %v905
        %1122 = vmatprep.subr.bf16.mxu0 %v910
        %1123 = vmatpush1.bf16.msra.mxu0 %v909
        %1124 = vmatprep.subr.bf16.mxu0 %v914
        %1125 = vmatpush1.bf16.msra.mxu0 %v913
        %1126 = vmatprep.subr.bf16.mxu0 %v918
        %1127 = vmatpush1.bf16.msra.mxu0 %v917
        %1128 = vmatprep.mubr.bf16.mxu0 %v632
        %1129 = vmatmul.mubr.bf16.gmra.mrb[0].mxu0 %v631
        %v1130 = vpop.f32.mrb[0].mxu0
        %v1131 = vadd.f32 %v574, %v1130
        %v1132 = vpop.f32.mrb[0].mxu0
        %v1133 = vadd.f32 %v578, %v1132
        %v1134 = vpop.f32.mrb[0].mxu0
        %v1135 = vadd.f32 %v574, %v1134
        %v1136 = vpop.f32.mrb[0].mxu0
        %v1137 = vadd.f32 %v578, %v1136
        %1138 = vmatprep.mubr.bf16.mxu0 %v634
        %1139 = vmatmul.mubr.bf16.gmra.mrb[0].mxu0 %v633
        %v1140 = vpop.f32.mrb[0].mxu0
        %v1141 = vadd.f32 %v574, %v1140
        %v1142 = vpop.f32.mrb[0].mxu0
        %v1143 = vadd.f32 %v578, %v1142
        %v1144 = vpop.f32.mrb[0].mxu0
        %v1145 = vadd.f32 %v574, %v1144
        %v1146 = vpop.f32.mrb[0].mxu0
        %v1147 = vadd.f32 %v578, %v1146
        %1148 = vmatprep.mubr.bf16.mxu0 %v636
        %1149 = vmatmul.mubr.bf16.gmra.mrb[0].mxu0 %v635
        %v1150 = vpop.f32.mrb[0].mxu0
        %v1151 = vadd.f32 %v574, %v1150
        %v1152 = vpop.f32.mrb[0].mxu0
        %v1153 = vadd.f32 %v578, %v1152
        %v1154 = vpop.f32.mrb[0].mxu0
        %v1155 = vadd.f32 %v574, %v1154
        %v1156 = vpop.f32.mrb[0].mxu0
        %v1157 = vadd.f32 %v578, %v1156
        %1158 = vmatprep.mubr.bf16.mxu0 %v638
        %1159 = vmatmul.mubr.bf16.gmra.mrb[0].mxu0 %v637
        %v1160 = vpop.f32.mrb[0].mxu0
        %v1161 = vadd.f32 %v574, %v1160
        %v1162 = vpop.f32.mrb[0].mxu0
        %v1163 = vadd.f32 %v578, %v1162
        %v1164 = vpop.f32.mrb[0].mxu0
        %v1165 = vadd.f32 %v574, %v1164
        %v1166 = vpop.f32.mrb[0].mxu0
        %v1167 = vadd.f32 %v578, %v1166
        %1168 = vmatprep.mubr.bf16.mxu0 %v640
        %1169 = vmatmul.mubr.bf16.gmra.mrb[0].mxu0 %v639
        %v1170 = vpop.f32.mrb[0].mxu0
        %v1171 = vadd.f32 %v574, %v1170
        %v1172 = vpop.f32.mrb[0].mxu0
        %v1173 = vadd.f32 %v578, %v1172
        %v1174 = vpop.f32.mrb[0].mxu0
        %v1175 = vadd.f32 %v574, %v1174
        %v1176 = vpop.f32.mrb[0].mxu0
        %v1177 = vadd.f32 %v578, %v1176
        %1178 = vmatprep.mubr.bf16.mxu0 %v642
        %1179 = vmatmul.mubr.bf16.gmra.mrb[0].mxu0 %v641
        %v1180 = vpop.f32.mrb[0].mxu0
        %v1181 = vadd.f32 %v574, %v1180
        %v1182 = vpop.f32.mrb[0].mxu0
        %v1183 = vadd.f32 %v578, %v1182
        %v1184 = vpop.f32.mrb[0].mxu0
        %v1185 = vadd.f32 %v574, %v1184
        %v1186 = vpop.f32.mrb[0].mxu0
        %v1187 = vadd.f32 %v578, %v1186
        %1188 = vmatprep.mubr.bf16.mxu0 %v644
        %1189 = vmatmul.mubr.bf16.gmra.mrb[0].mxu0 %v643
        %v1190 = vpop.f32.mrb[0].mxu0
        %v1191 = vadd.f32 %v574, %v1190
        %v1192 = vpop.f32.mrb[0].mxu0
        %v1193 = vadd.f32 %v578, %v1192
        %v1194 = vpop.f32.mrb[0].mxu0
        %v1195 = vadd.f32 %v574, %v1194
        %v1196 = vpop.f32.mrb[0].mxu0
        %v1197 = vadd.f32 %v578, %v1196
        %1198 = vmatprep.mubr.bf16.mxu0 %v646
        %1199 = vmatmul.mubr.bf16.gmra.mrb[0].mxu0 %v645
        %v1200 = vpop.f32.mrb[0].mxu0
        %v1201 = vadd.f32 %v574, %v1200
        %v1202 = vpop.f32.mrb[0].mxu0
        %v1203 = vadd.f32 %v578, %v1202
        %v1204 = vpop.f32.mrb[0].mxu0
        %v1205 = vadd.f32 %v574, %v1204
        %v1206 = vpop.f32.mrb[0].mxu0
        %v1207 = vadd.f32 %v578, %v1206
        %1208 = vdwg.mxu0
        %v1209 = vmax.f32 %v1018, 0.0
        %v1210 = vmax.f32 %v1020, 0.0
        %v1211 = vmax.f32 %v1131, 0.0
        %v1212 = vmax.f32 %v1133, 0.0
        %v1213 = vmax.f32 %v1022, 0.0
        %v1214 = vmax.f32 %v1024, 0.0
        %v1215 = vmax.f32 %v1135, 0.0
        %v1216 = vmax.f32 %v1137, 0.0
        %v1217 = vmax.f32 %v1028, 0.0
        %v1218 = vmax.f32 %v1030, 0.0
        %v1219 = vmax.f32 %v1141, 0.0
        %v1220 = vmax.f32 %v1143, 0.0
        %v1221 = vmax.f32 %v1032, 0.0
        %v1222 = vmax.f32 %v1034, 0.0
        %v1223 = vmax.f32 %v1145, 0.0
        %v1224 = vmax.f32 %v1147, 0.0
        %v1225 = vmax.f32 %v1038, 0.0
        %v1226 = vmax.f32 %v1040, 0.0
        %v1227 = vmax.f32 %v1151, 0.0
        %v1228 = vmax.f32 %v1153, 0.0
        %v1229 = vmax.f32 %v1042, 0.0
        %v1230 = vmax.f32 %v1044, 0.0
        %v1231 = vmax.f32 %v1155, 0.0
        %v1232 = vmax.f32 %v1157, 0.0
        %v1233 = vmax.f32 %v1048, 0.0
        %v1234 = vmax.f32 %v1050, 0.0
        %v1235 = vmax.f32 %v1161, 0.0
        %v1236 = vmax.f32 %v1163, 0.0
        %v1237 = vmax.f32 %v1052, 0.0
        %v1238 = vmax.f32 %v1054, 0.0
        %v1239 = vmax.f32 %v1165, 0.0
        %v1240 = vmax.f32 %v1167, 0.0
        %v1241 = vmax.f32 %v1058, 0.0
        %v1242 = vmax.f32 %v1060, 0.0
        %v1243 = vmax.f32 %v1171, 0.0
        %v1244 = vmax.f32 %v1173, 0.0
        %v1245 = vmax.f32 %v1062, 0.0
        %v1246 = vmax.f32 %v1064, 0.0
        %v1247 = vmax.f32 %v1175, 0.0
        %v1248 = vmax.f32 %v1177, 0.0
        %v1249 = vmax.f32 %v1068, 0.0
        %v1250 = vmax.f32 %v1070, 0.0
        %v1251 = vmax.f32 %v1181, 0.0
        %v1252 = vmax.f32 %v1183, 0.0
        %v1253 = vmax.f32 %v1072, 0.0
        %v1254 = vmax.f32 %v1074, 0.0
        %v1255 = vmax.f32 %v1185, 0.0
        %v1256 = vmax.f32 %v1187, 0.0
        %v1257 = vmax.f32 %v1078, 0.0
        %v1258 = vmax.f32 %v1080, 0.0
        %v1259 = vmax.f32 %v1191, 0.0
        %v1260 = vmax.f32 %v1193, 0.0
        %v1261 = vmax.f32 %v1082, 0.0
        %v1262 = vmax.f32 %v1084, 0.0
        %v1263 = vmax.f32 %v1195, 0.0
        %v1264 = vmax.f32 %v1197, 0.0
        %v1265 = vmax.f32 %v1088, 0.0
        %v1266 = vmax.f32 %v1090, 0.0
        %v1267 = vmax.f32 %v1201, 0.0
        %v1268 = vmax.f32 %v1203, 0.0
        %v1269 = vmax.f32 %v1092, 0.0
        %v1270 = vmax.f32 %v1094, 0.0
        %v1271 = vmax.f32 %v1205, 0.0
        %v1272 = vmax.f32 %v1207, 0.0
        %v1273 = vld [vmem:[#allocation2] sm:$0xff]
        %v1274 = vld [vmem:[#allocation2 + $0x8] sm:$0xff]
        %v1275 = vld [vmem:[#allocation2 + $0x10] sm:$0xff]
        %v1276 = vld [vmem:[#allocation2 + $0x18] sm:$0xff]
        %v1277 = vld [vmem:[#allocation2 + $0x20] sm:$0xff]
        %v1278 = vld [vmem:[#allocation2 + $0x28] sm:$0xff]
        %v1279 = vld [vmem:[#allocation2 + $0x30] sm:$0xff]
        %v1280 = vld [vmem:[#allocation2 + $0x38] sm:$0xff]
        %v1281 = vld [vmem:[#allocation2 + $0x40] sm:$0xff]
        %v1282 = vld [vmem:[#allocation2 + $0x48] sm:$0xff]
        %v1283 = vld [vmem:[#allocation2 + $0x50] sm:$0xff]
        %v1284 = vld [vmem:[#allocation2 + $0x58] sm:$0xff]
        %v1285 = vld [vmem:[#allocation2 + $0x60] sm:$0xff]
        %v1286 = vld [vmem:[#allocation2 + $0x68] sm:$0xff]
        %v1287 = vld [vmem:[#allocation2 + $0x70] sm:$0xff]
        %v1288 = vld [vmem:[#allocation2 + $0x78] sm:$0xff]
        %v1289 = vld [vmem:[#allocation2 + $0x80] sm:$0xff]
        %v1290 = vld [vmem:[#allocation2 + $0x88] sm:$0xff]
        %v1291 = vld [vmem:[#allocation2 + $0x90] sm:$0xff]
        %v1292 = vld [vmem:[#allocation2 + $0x98] sm:$0xff]
        %v1293 = vld [vmem:[#allocation2 + $0xa0] sm:$0xff]
        %v1294 = vld [vmem:[#allocation2 + $0xa8] sm:$0xff]
        %v1295 = vld [vmem:[#allocation2 + $0xb0] sm:$0xff]
        %v1296 = vld [vmem:[#allocation2 + $0xb8] sm:$0xff]
        %v1297 = vld [vmem:[#allocation2 + $0xc0] sm:$0xff]
        %v1298 = vld [vmem:[#allocation2 + $0xc8] sm:$0xff]
        %v1299 = vld [vmem:[#allocation2 + $0xd0] sm:$0xff]
        %v1300 = vld [vmem:[#allocation2 + $0xd8] sm:$0xff]
        %v1301 = vld [vmem:[#allocation2 + $0xe0] sm:$0xff]
        %v1302 = vld [vmem:[#allocation2 + $0xe8] sm:$0xff]
        %v1303 = vld [vmem:[#allocation2 + $0xf0] sm:$0xff]
        %v1304 = vld [vmem:[#allocation2 + $0xf8] sm:$0xff]
        %v1305 = vpack.c.bf16 %v1213, %v1209
        %v1306 = vpack.c.bf16 %v1214, %v1210
        %v1307 = vpack.c.bf16 %v1215, %v1211
        %v1308 = vpack.c.bf16 %v1216, %v1212
        %v1309 = vpack.c.bf16 %v1221, %v1217
        %v1310 = vpack.c.bf16 %v1222, %v1218
        %v1311 = vpack.c.bf16 %v1223, %v1219
        %v1312 = vpack.c.bf16 %v1224, %v1220
        %v1313 = vpack.c.bf16 %v1229, %v1225
        %v1314 = vpack.c.bf16 %v1230, %v1226
        %v1315 = vpack.c.bf16 %v1231, %v1227
        %v1316 = vpack.c.bf16 %v1232, %v1228
        %v1317 = vpack.c.bf16 %v1237, %v1233
        %v1318 = vpack.c.bf16 %v1238, %v1234
        %v1319 = vpack.c.bf16 %v1239, %v1235
        %v1320 = vpack.c.bf16 %v1240, %v1236
        %v1321 = vpack.c.bf16 %v1245, %v1241
        %v1322 = vpack.c.bf16 %v1246, %v1242
        %v1323 = vpack.c.bf16 %v1247, %v1243
        %v1324 = vpack.c.bf16 %v1248, %v1244
        %v1325 = vpack.c.bf16 %v1253, %v1249
        %v1326 = vpack.c.bf16 %v1254, %v1250
        %v1327 = vpack.c.bf16 %v1255, %v1251
        %v1328 = vpack.c.bf16 %v1256, %v1252
        %v1329 = vpack.c.bf16 %v1261, %v1257
        %v1330 = vpack.c.bf16 %v1262, %v1258
        %v1331 = vpack.c.bf16 %v1263, %v1259
        %v1332 = vpack.c.bf16 %v1264, %v1260
        %v1333 = vpack.c.bf16 %v1269, %v1265
        %v1334 = vpack.c.bf16 %v1270, %v1266
        %v1335 = vpack.c.bf16 %v1271, %v1267
        %v1336 = vpack.c.bf16 %v1272, %v1268
        %v1337 = vld [vmem:[%s442] sm:$0xff]
        %v1338 = vld [vmem:[%s442 + $0x8] sm:$0xff]
        %v1339 = vld [vmem:[%s442 + $0x10] sm:$0xff]
        %v1340 = vld [vmem:[%s442 + $0x18] sm:$0xff]
        %v1341 = vld [vmem:[%s442 + $0x20] sm:$0xff]
        %v1342 = vld [vmem:[%s442 + $0x28] sm:$0xff]
        %v1343 = vld [vmem:[%s442 + $0x30] sm:$0xff]
        %v1344 = vld [vmem:[%s442 + $0x38] sm:$0xff]
        %v1345 = vld [vmem:[%s442 + $0x40] sm:$0xff]
        %v1346 = vld [vmem:[%s442 + $0x48] sm:$0xff]
        %v1347 = vld [vmem:[%s442 + $0x50] sm:$0xff]
        %v1348 = vld [vmem:[%s442 + $0x58] sm:$0xff]
        %v1349 = vld [vmem:[%s442 + $0x60] sm:$0xff]
        %v1350 = vld [vmem:[%s442 + $0x68] sm:$0xff]
        %v1351 = vld [vmem:[%s442 + $0x70] sm:$0xff]
        %v1352 = vld [vmem:[%s442 + $0x78] sm:$0xff]
        %v1353 = vld [vmem:[%s442 + $0x80] sm:$0xff]
        %v1354 = vld [vmem:[%s442 + $0x88] sm:$0xff]
        %v1355 = vld [vmem:[%s442 + $0x90] sm:$0xff]
        %v1356 = vld [vmem:[%s442 + $0x98] sm:$0xff]
        %v1357 = vld [vmem:[%s442 + $0xa0] sm:$0xff]
        %v1358 = vld [vmem:[%s442 + $0xa8] sm:$0xff]
        %v1359 = vld [vmem:[%s442 + $0xb0] sm:$0xff]
        %v1360 = vld [vmem:[%s442 + $0xb8] sm:$0xff]
        %v1361 = vld [vmem:[%s442 + $0xc0] sm:$0xff]
        %v1362 = vld [vmem:[%s442 + $0xc8] sm:$0xff]
        %v1363 = vld [vmem:[%s442 + $0xd0] sm:$0xff]
        %v1364 = vld [vmem:[%s442 + $0xd8] sm:$0xff]
        %v1365 = vld [vmem:[%s442 + $0xe0] sm:$0xff]
        %v1366 = vld [vmem:[%s442 + $0xe8] sm:$0xff]
        %v1367 = vld [vmem:[%s442 + $0xf0] sm:$0xff]
        %v1368 = vld [vmem:[%s442 + $0xf8] sm:$0xff]
        %v1369 = vld [vmem:[%s442 + $0x100] sm:$0xff]
        %v1370 = vld [vmem:[%s442 + $0x108] sm:$0xff]
        %v1371 = vld [vmem:[%s442 + $0x110] sm:$0xff]
        %v1372 = vld [vmem:[%s442 + $0x118] sm:$0xff]
        %v1373 = vld [vmem:[%s442 + $0x120] sm:$0xff]
        %v1374 = vld [vmem:[%s442 + $0x128] sm:$0xff]
        %v1375 = vld [vmem:[%s442 + $0x130] sm:$0xff]
        %v1376 = vld [vmem:[%s442 + $0x138] sm:$0xff]
        %v1377 = vld [vmem:[%s442 + $0x140] sm:$0xff]
        %v1378 = vld [vmem:[%s442 + $0x148] sm:$0xff]
        %v1379 = vld [vmem:[%s442 + $0x150] sm:$0xff]
        %v1380 = vld [vmem:[%s442 + $0x158] sm:$0xff]
        %v1381 = vld [vmem:[%s442 + $0x160] sm:$0xff]
        %v1382 = vld [vmem:[%s442 + $0x168] sm:$0xff]
        %v1383 = vld [vmem:[%s442 + $0x170] sm:$0xff]
        %v1384 = vld [vmem:[%s442 + $0x178] sm:$0xff]
        %v1385 = vld [vmem:[%s442 + $0x180] sm:$0xff]
        %v1386 = vld [vmem:[%s442 + $0x188] sm:$0xff]
        %v1387 = vld [vmem:[%s442 + $0x190] sm:$0xff]
        %v1388 = vld [vmem:[%s442 + $0x198] sm:$0xff]
        %v1389 = vld [vmem:[%s442 + $0x1a0] sm:$0xff]
        %v1390 = vld [vmem:[%s442 + $0x1a8] sm:$0xff]
        %v1391 = vld [vmem:[%s442 + $0x1b0] sm:$0xff]
        %v1392 = vld [vmem:[%s442 + $0x1b8] sm:$0xff]
        %v1393 = vld [vmem:[%s442 + $0x1c0] sm:$0xff]
        %v1394 = vld [vmem:[%s442 + $0x1c8] sm:$0xff]
        %v1395 = vld [vmem:[%s442 + $0x1d0] sm:$0xff]
        %v1396 = vld [vmem:[%s442 + $0x1d8] sm:$0xff]
        %v1397 = vld [vmem:[%s442 + $0x1e0] sm:$0xff]
        %v1398 = vld [vmem:[%s442 + $0x1e8] sm:$0xff]
        %v1399 = vld [vmem:[%s442 + $0x1f0] sm:$0xff]
        %v1400 = vld [vmem:[%s442 + $0x1f8] sm:$0xff]
        %v1465 = vunpack.c.l.b16 %v1337
        %v1466 = vunpack.c.h.b16 %v1337
        %v1467 = vunpack.c.l.b16 %v1338
        %v1468 = vunpack.c.h.b16 %v1338
        %v1469 = vunpack.c.l.b16 %v1339
        %v1470 = vunpack.c.h.b16 %v1339
        %v1471 = vunpack.c.l.b16 %v1340
        %v1472 = vunpack.c.h.b16 %v1340
        %v1473 = vunpack.c.l.b16 %v1341
        %v1474 = vunpack.c.h.b16 %v1341
        %v1475 = vunpack.c.l.b16 %v1342
        %v1476 = vunpack.c.h.b16 %v1342
        %v1477 = vunpack.c.l.b16 %v1343
        %v1478 = vunpack.c.h.b16 %v1343
        %v1479 = vunpack.c.l.b16 %v1344
        %v1480 = vunpack.c.h.b16 %v1344
        %v1481 = vunpack.c.l.b16 %v1345
        %v1482 = vunpack.c.h.b16 %v1345
        %v1483 = vunpack.c.l.b16 %v1346
        %v1484 = vunpack.c.h.b16 %v1346
        %v1485 = vunpack.c.l.b16 %v1347
        %v1486 = vunpack.c.h.b16 %v1347
        %v1487 = vunpack.c.l.b16 %v1348
        %v1488 = vunpack.c.h.b16 %v1348
        %v1489 = vunpack.c.l.b16 %v1349
        %v1490 = vunpack.c.h.b16 %v1349
        %v1491 = vunpack.c.l.b16 %v1350
        %v1492 = vunpack.c.h.b16 %v1350
        %v1493 = vunpack.c.l.b16 %v1351
        %v1494 = vunpack.c.h.b16 %v1351
        %v1495 = vunpack.c.l.b16 %v1352
        %v1496 = vunpack.c.h.b16 %v1352
        %v1497 = vunpack.c.l.b16 %v1353
        %v1498 = vunpack.c.h.b16 %v1353
        %v1499 = vunpack.c.l.b16 %v1354
        %v1500 = vunpack.c.h.b16 %v1354
        %v1501 = vunpack.c.l.b16 %v1355
        %v1502 = vunpack.c.h.b16 %v1355
        %v1503 = vunpack.c.l.b16 %v1356
        %v1504 = vunpack.c.h.b16 %v1356
        %v1505 = vunpack.c.l.b16 %v1357
        %v1506 = vunpack.c.h.b16 %v1357
        %v1507 = vunpack.c.l.b16 %v1358
        %v1508 = vunpack.c.h.b16 %v1358
        %v1509 = vunpack.c.l.b16 %v1359
        %v1510 = vunpack.c.h.b16 %v1359
        %v1511 = vunpack.c.l.b16 %v1360
        %v1512 = vunpack.c.h.b16 %v1360
        %v1513 = vunpack.c.l.b16 %v1361
        %v1514 = vunpack.c.h.b16 %v1361
        %v1515 = vunpack.c.l.b16 %v1362
        %v1516 = vunpack.c.h.b16 %v1362
        %v1517 = vunpack.c.l.b16 %v1363
        %v1518 = vunpack.c.h.b16 %v1363
        %v1519 = vunpack.c.l.b16 %v1364
        %v1520 = vunpack.c.h.b16 %v1364
        %v1521 = vunpack.c.l.b16 %v1365
        %v1522 = vunpack.c.h.b16 %v1365
        %v1523 = vunpack.c.l.b16 %v1366
        %v1524 = vunpack.c.h.b16 %v1366
        %v1525 = vunpack.c.l.b16 %v1367
        %v1526 = vunpack.c.h.b16 %v1367
        %v1527 = vunpack.c.l.b16 %v1368
        %v1528 = vunpack.c.h.b16 %v1368
        %v1529 = vunpack.c.l.b16 %v1369
        %v1530 = vunpack.c.h.b16 %v1369
        %v1531 = vunpack.c.l.b16 %v1370
        %v1532 = vunpack.c.h.b16 %v1370
        %v1533 = vunpack.c.l.b16 %v1371
        %v1534 = vunpack.c.h.b16 %v1371
        %v1535 = vunpack.c.l.b16 %v1372
        %v1536 = vunpack.c.h.b16 %v1372
        %v1537 = vunpack.c.l.b16 %v1373
        %v1538 = vunpack.c.h.b16 %v1373
        %v1539 = vunpack.c.l.b16 %v1374
        %v1540 = vunpack.c.h.b16 %v1374
        %v1541 = vunpack.c.l.b16 %v1375
        %v1542 = vunpack.c.h.b16 %v1375
        %v1543 = vunpack.c.l.b16 %v1376
        %v1544 = vunpack.c.h.b16 %v1376
        %v1545 = vunpack.c.l.b16 %v1377
        %v1546 = vunpack.c.h.b16 %v1377
        %v1547 = vunpack.c.l.b16 %v1378
        %v1548 = vunpack.c.h.b16 %v1378
        %v1549 = vunpack.c.l.b16 %v1379
        %v1550 = vunpack.c.h.b16 %v1379
        %v1551 = vunpack.c.l.b16 %v1380
        %v1552 = vunpack.c.h.b16 %v1380
        %v1553 = vunpack.c.l.b16 %v1381
        %v1554 = vunpack.c.h.b16 %v1381
        %v1555 = vunpack.c.l.b16 %v1382
        %v1556 = vunpack.c.h.b16 %v1382
        %v1557 = vunpack.c.l.b16 %v1383
        %v1558 = vunpack.c.h.b16 %v1383
        %v1559 = vunpack.c.l.b16 %v1384
        %v1560 = vunpack.c.h.b16 %v1384
        %v1561 = vunpack.c.l.b16 %v1385
        %v1562 = vunpack.c.h.b16 %v1385
        %v1563 = vunpack.c.l.b16 %v1386
        %v1564 = vunpack.c.h.b16 %v1386
        %v1565 = vunpack.c.l.b16 %v1387
        %v1566 = vunpack.c.h.b16 %v1387
        %v1567 = vunpack.c.l.b16 %v1388
        %v1568 = vunpack.c.h.b16 %v1388
        %v1569 = vunpack.c.l.b16 %v1389
        %v1570 = vunpack.c.h.b16 %v1389
        %v1571 = vunpack.c.l.b16 %v1390
        %v1572 = vunpack.c.h.b16 %v1390
        %v1573 = vunpack.c.l.b16 %v1391
        %v1574 = vunpack.c.h.b16 %v1391
        %v1575 = vunpack.c.l.b16 %v1392
        %v1576 = vunpack.c.h.b16 %v1392
        %v1577 = vunpack.c.l.b16 %v1393
        %v1578 = vunpack.c.h.b16 %v1393
        %v1579 = vunpack.c.l.b16 %v1394
        %v1580 = vunpack.c.h.b16 %v1394
        %v1581 = vunpack.c.l.b16 %v1395
        %v1582 = vunpack.c.h.b16 %v1395
        %v1583 = vunpack.c.l.b16 %v1396
        %v1584 = vunpack.c.h.b16 %v1396
        %v1585 = vunpack.c.l.b16 %v1397
        %v1586 = vunpack.c.h.b16 %v1397
        %v1587 = vunpack.c.l.b16 %v1398
        %v1588 = vunpack.c.h.b16 %v1398
        %v1589 = vunpack.c.l.b16 %v1399
        %v1590 = vunpack.c.h.b16 %v1399
        %v1591 = vunpack.c.l.b16 %v1400
        %v1592 = vunpack.c.h.b16 %v1400
        %v1593 = vpack.c.b16 %v1467, %v1465
        %v1594 = vpack.c.b16 %v1468, %v1466
        %v1595 = vpack.c.b16 %v1471, %v1469
        %v1596 = vpack.c.b16 %v1472, %v1470
        %v1597 = vpack.c.b16 %v1475, %v1473
        %v1598 = vpack.c.b16 %v1476, %v1474
        %v1599 = vpack.c.b16 %v1479, %v1477
        %v1600 = vpack.c.b16 %v1480, %v1478
        %v1601 = vpack.c.b16 %v1483, %v1481
        %v1602 = vpack.c.b16 %v1484, %v1482
        %v1603 = vpack.c.b16 %v1487, %v1485
        %v1604 = vpack.c.b16 %v1488, %v1486
        %v1605 = vpack.c.b16 %v1491, %v1489
        %v1606 = vpack.c.b16 %v1492, %v1490
        %v1607 = vpack.c.b16 %v1495, %v1493
        %v1608 = vpack.c.b16 %v1496, %v1494
        %v1609 = vpack.c.b16 %v1499, %v1497
        %v1610 = vpack.c.b16 %v1500, %v1498
        %v1611 = vpack.c.b16 %v1503, %v1501
        %v1612 = vpack.c.b16 %v1504, %v1502
        %v1613 = vpack.c.b16 %v1507, %v1505
        %v1614 = vpack.c.b16 %v1508, %v1506
        %v1615 = vpack.c.b16 %v1511, %v1509
        %v1616 = vpack.c.b16 %v1512, %v1510
        %v1617 = vpack.c.b16 %v1515, %v1513
        %v1618 = vpack.c.b16 %v1516, %v1514
        %v1619 = vpack.c.b16 %v1519, %v1517
        %v1620 = vpack.c.b16 %v1520, %v1518
        %v1621 = vpack.c.b16 %v1523, %v1521
        %v1622 = vpack.c.b16 %v1524, %v1522
        %v1623 = vpack.c.b16 %v1527, %v1525
        %v1624 = vpack.c.b16 %v1528, %v1526
        %v1625 = vpack.c.b16 %v1531, %v1529
        %v1626 = vpack.c.b16 %v1532, %v1530
        %v1627 = vpack.c.b16 %v1535, %v1533
        %v1628 = vpack.c.b16 %v1536, %v1534
        %v1629 = vpack.c.b16 %v1539, %v1537
        %v1630 = vpack.c.b16 %v1540, %v1538
        %v1631 = vpack.c.b16 %v1543, %v1541
        %v1632 = vpack.c.b16 %v1544, %v1542
        %v1633 = vpack.c.b16 %v1547, %v1545
        %v1634 = vpack.c.b16 %v1548, %v1546
        %v1635 = vpack.c.b16 %v1551, %v1549
        %v1636 = vpack.c.b16 %v1552, %v1550
        %v1637 = vpack.c.b16 %v1555, %v1553
        %v1638 = vpack.c.b16 %v1556, %v1554
        %v1639 = vpack.c.b16 %v1559, %v1557
        %v1640 = vpack.c.b16 %v1560, %v1558
        %v1641 = vpack.c.b16 %v1563, %v1561
        %v1642 = vpack.c.b16 %v1564, %v1562
        %v1643 = vpack.c.b16 %v1567, %v1565
        %v1644 = vpack.c.b16 %v1568, %v1566
        %v1645 = vpack.c.b16 %v1571, %v1569
        %v1646 = vpack.c.b16 %v1572, %v1570
        %v1647 = vpack.c.b16 %v1575, %v1573
        %v1648 = vpack.c.b16 %v1576, %v1574
        %v1649 = vpack.c.b16 %v1579, %v1577
        %v1650 = vpack.c.b16 %v1580, %v1578
        %v1651 = vpack.c.b16 %v1583, %v1581
        %v1652 = vpack.c.b16 %v1584, %v1582
        %v1653 = vpack.c.b16 %v1587, %v1585
        %v1654 = vpack.c.b16 %v1588, %v1586
        %v1655 = vpack.c.b16 %v1591, %v1589
        %v1656 = vpack.c.b16 %v1592, %v1590
        %1721 = vmatprep.subr.bf16.mxu0 %v1594
        %1722 = vmatpush1.bf16.msra.mxu0 %v1593
        %1723 = vmatprep.subr.bf16.mxu0 %v1596
        %1724 = vmatpush1.bf16.msra.mxu0 %v1595
        %1725 = vmatprep.subr.bf16.mxu0 %v1598
        %1726 = vmatpush1.bf16.msra.mxu0 %v1597
        %1727 = vmatprep.subr.bf16.mxu0 %v1600
        %1728 = vmatpush1.bf16.msra.mxu0 %v1599
        %1729 = vmatprep.subr.bf16.mxu0 %v1602
        %1730 = vmatpush1.bf16.msra.mxu0 %v1601
        %1731 = vmatprep.subr.bf16.mxu0 %v1604
        %1732 = vmatpush1.bf16.msra.mxu0 %v1603
        %1733 = vmatprep.subr.bf16.mxu0 %v1606
        %1734 = vmatpush1.bf16.msra.mxu0 %v1605
        %1735 = vmatprep.subr.bf16.mxu0 %v1608
        %1736 = vmatpush1.bf16.msra.mxu0 %v1607
        %1737 = vmatprep.subr.bf16.mxu0 %v1610
        %1738 = vmatpush1.bf16.msra.mxu0 %v1609
        %1739 = vmatprep.subr.bf16.mxu0 %v1612
        %1740 = vmatpush1.bf16.msra.mxu0 %v1611
        %1741 = vmatprep.subr.bf16.mxu0 %v1614
        %1742 = vmatpush1.bf16.msra.mxu0 %v1613
        %1743 = vmatprep.subr.bf16.mxu0 %v1616
        %1744 = vmatpush1.bf16.msra.mxu0 %v1615
        %1745 = vmatprep.subr.bf16.mxu0 %v1618
        %1746 = vmatpush1.bf16.msra.mxu0 %v1617
        %1747 = vmatprep.subr.bf16.mxu0 %v1620
        %1748 = vmatpush1.bf16.msra.mxu0 %v1619
        %1749 = vmatprep.subr.bf16.mxu0 %v1622
        %1750 = vmatpush1.bf16.msra.mxu0 %v1621
        %1751 = vmatprep.subr.bf16.mxu0 %v1624
        %1752 = vmatpush1.bf16.msra.mxu0 %v1623
        %1753 = vmatprep.mubr.bf16.mxu0 %v1306
        %1754 = vmatmul.mubr.bf16.gmra.mrb[0].mxu0 %v1305
        %v1755 = vpop.f32.mrb[0].mxu0
        %v1756 = vadd.f32 0.0, %v1755
        %v1757 = vpop.f32.mrb[0].mxu0
        %v1758 = vadd.f32 0.0, %v1757
        %v1759 = vpop.f32.mrb[0].mxu0
        %v1760 = vadd.f32 0.0, %v1759
        %v1761 = vpop.f32.mrb[0].mxu0
        %v1762 = vadd.f32 0.0, %v1761
        %1763 = vmatprep.mubr.bf16.mxu0 %v1310
        %1764 = vmatmul.mubr.bf16.gmra.mrb[0].mxu0 %v1309
        %v1765 = vpop.f32.mrb[0].mxu0
        %v1766 = vadd.f32 0.0, %v1765
        %v1767 = vpop.f32.mrb[0].mxu0
        %v1768 = vadd.f32 0.0, %v1767
        %v1769 = vpop.f32.mrb[0].mxu0
        %v1770 = vadd.f32 0.0, %v1769
        %v1771 = vpop.f32.mrb[0].mxu0
        %v1772 = vadd.f32 0.0, %v1771
        %1773 = vmatprep.mubr.bf16.mxu0 %v1314
        %1774 = vmatmul.mubr.bf16.gmra.mrb[0].mxu0 %v1313
        %v1775 = vpop.f32.mrb[0].mxu0
        %v1776 = vadd.f32 0.0, %v1775
        %v1777 = vpop.f32.mrb[0].mxu0
        %v1778 = vadd.f32 0.0, %v1777
        %v1779 = vpop.f32.mrb[0].mxu0
        %v1780 = vadd.f32 0.0, %v1779
        %v1781 = vpop.f32.mrb[0].mxu0
        %v1782 = vadd.f32 0.0, %v1781
        %1783 = vmatprep.mubr.bf16.mxu0 %v1318
        %1784 = vmatmul.mubr.bf16.gmra.mrb[0].mxu0 %v1317
        %v1785 = vpop.f32.mrb[0].mxu0
        %v1786 = vadd.f32 0.0, %v1785
        %v1787 = vpop.f32.mrb[0].mxu0
        %v1788 = vadd.f32 0.0, %v1787
        %v1789 = vpop.f32.mrb[0].mxu0
        %v1790 = vadd.f32 0.0, %v1789
        %v1791 = vpop.f32.mrb[0].mxu0
        %v1792 = vadd.f32 0.0, %v1791
        %1793 = vmatprep.mubr.bf16.mxu0 %v1322
        %1794 = vmatmul.mubr.bf16.gmra.mrb[0].mxu0 %v1321
        %v1795 = vpop.f32.mrb[0].mxu0
        %v1796 = vadd.f32 0.0, %v1795
        %v1797 = vpop.f32.mrb[0].mxu0
        %v1798 = vadd.f32 0.0, %v1797
        %v1799 = vpop.f32.mrb[0].mxu0
        %v1800 = vadd.f32 0.0, %v1799
        %v1801 = vpop.f32.mrb[0].mxu0
        %v1802 = vadd.f32 0.0, %v1801
        %1803 = vmatprep.mubr.bf16.mxu0 %v1326
        %1804 = vmatmul.mubr.bf16.gmra.mrb[0].mxu0 %v1325
        %v1805 = vpop.f32.mrb[0].mxu0
        %v1806 = vadd.f32 0.0, %v1805
        %v1807 = vpop.f32.mrb[0].mxu0
        %v1808 = vadd.f32 0.0, %v1807
        %v1809 = vpop.f32.mrb[0].mxu0
        %v1810 = vadd.f32 0.0, %v1809
        %v1811 = vpop.f32.mrb[0].mxu0
        %v1812 = vadd.f32 0.0, %v1811
        %1813 = vmatprep.mubr.bf16.mxu0 %v1330
        %1814 = vmatmul.mubr.bf16.gmra.mrb[0].mxu0 %v1329
        %v1815 = vpop.f32.mrb[0].mxu0
        %v1816 = vadd.f32 0.0, %v1815
        %v1817 = vpop.f32.mrb[0].mxu0
        %v1818 = vadd.f32 0.0, %v1817
        %v1819 = vpop.f32.mrb[0].mxu0
        %v1820 = vadd.f32 0.0, %v1819
        %v1821 = vpop.f32.mrb[0].mxu0
        %v1822 = vadd.f32 0.0, %v1821
        %1823 = vmatprep.mubr.bf16.mxu0 %v1334
        %1824 = vmatmul.mubr.bf16.gmra.mrb[0].mxu0 %v1333
        %v1825 = vpop.f32.mrb[0].mxu0
        %v1826 = vadd.f32 0.0, %v1825
        %v1827 = vpop.f32.mrb[0].mxu0
        %v1828 = vadd.f32 0.0, %v1827
        %v1829 = vpop.f32.mrb[0].mxu0
        %v1830 = vadd.f32 0.0, %v1829
        %v1831 = vpop.f32.mrb[0].mxu0
        %v1832 = vadd.f32 0.0, %v1831
        %1833 = vdwg.mxu0
        %1834 = vmatprep.subr.bf16.mxu0 %v1626
        %1835 = vmatpush1.bf16.msra.mxu0 %v1625
        %1836 = vmatprep.subr.bf16.mxu0 %v1628
        %1837 = vmatpush1.bf16.msra.mxu0 %v1627
        %1838 = vmatprep.subr.bf16.mxu0 %v1630
        %1839 = vmatpush1.bf16.msra.mxu0 %v1629
        %1840 = vmatprep.subr.bf16.mxu0 %v1632
        %1841 = vmatpush1.bf16.msra.mxu0 %v1631
        %1842 = vmatprep.subr.bf16.mxu0 %v1634
        %1843 = vmatpush1.bf16.msra.mxu0 %v1633
        %1844 = vmatprep.subr.bf16.mxu0 %v1636
        %1845 = vmatpush1.bf16.msra.mxu0 %v1635
        %1846 = vmatprep.subr.bf16.mxu0 %v1638
        %1847 = vmatpush1.bf16.msra.mxu0 %v1637
        %1848 = vmatprep.subr.bf16.mxu0 %v1640
        %1849 = vmatpush1.bf16.msra.mxu0 %v1639
        %1850 = vmatprep.subr.bf16.mxu0 %v1642
        %1851 = vmatpush1.bf16.msra.mxu0 %v1641
        %1852 = vmatprep.subr.bf16.mxu0 %v1644
        %1853 = vmatpush1.bf16.msra.mxu0 %v1643
        %1854 = vmatprep.subr.bf16.mxu0 %v1646
        %1855 = vmatpush1.bf16.msra.mxu0 %v1645
        %1856 = vmatprep.subr.bf16.mxu0 %v1648
        %1857 = vmatpush1.bf16.msra.mxu0 %v1647
        %1858 = vmatprep.subr.bf16.mxu0 %v1650
        %1859 = vmatpush1.bf16.msra.mxu0 %v1649
        %1860 = vmatprep.subr.bf16.mxu0 %v1652
        %1861 = vmatpush1.bf16.msra.mxu0 %v1651
        %1862 = vmatprep.subr.bf16.mxu0 %v1654
        %1863 = vmatpush1.bf16.msra.mxu0 %v1653
        %1864 = vmatprep.subr.bf16.mxu0 %v1656
        %1865 = vmatpush1.bf16.msra.mxu0 %v1655
        %1866 = vmatprep.mubr.bf16.mxu0 %v1308
        %1867 = vmatmul.mubr.bf16.gmra.mrb[0].mxu0 %v1307
        %v1868 = vpop.f32.mrb[0].mxu0
        %v1869 = vadd.f32 %v1756, %v1868
        %v1870 = vpop.f32.mrb[0].mxu0
        %v1871 = vadd.f32 %v1758, %v1870
        %v1872 = vpop.f32.mrb[0].mxu0
        %v1873 = vadd.f32 %v1760, %v1872
        %v1874 = vpop.f32.mrb[0].mxu0
        %v1875 = vadd.f32 %v1762, %v1874
        %1876 = vmatprep.mubr.bf16.mxu0 %v1312
        %1877 = vmatmul.mubr.bf16.gmra.mrb[0].mxu0 %v1311
        %v1878 = vpop.f32.mrb[0].mxu0
        %v1879 = vadd.f32 %v1766, %v1878
        %v1880 = vpop.f32.mrb[0].mxu0
        %v1881 = vadd.f32 %v1768, %v1880
        %v1882 = vpop.f32.mrb[0].mxu0
        %v1883 = vadd.f32 %v1770, %v1882
        %v1884 = vpop.f32.mrb[0].mxu0
        %v1885 = vadd.f32 %v1772, %v1884
        %1886 = vmatprep.mubr.bf16.mxu0 %v1316
        %1887 = vmatmul.mubr.bf16.gmra.mrb[0].mxu0 %v1315
        %v1888 = vpop.f32.mrb[0].mxu0
        %v1889 = vadd.f32 %v1776, %v1888
        %v1890 = vpop.f32.mrb[0].mxu0
        %v1891 = vadd.f32 %v1778, %v1890
        %v1892 = vpop.f32.mrb[0].mxu0
        %v1893 = vadd.f32 %v1780, %v1892
        %v1894 = vpop.f32.mrb[0].mxu0
        %v1895 = vadd.f32 %v1782, %v1894
        %1896 = vmatprep.mubr.bf16.mxu0 %v1320
        %1897 = vmatmul.mubr.bf16.gmra.mrb[0].mxu0 %v1319
        %v1898 = vpop.f32.mrb[0].mxu0
        %v1899 = vadd.f32 %v1786, %v1898
        %v1900 = vpop.f32.mrb[0].mxu0
        %v1901 = vadd.f32 %v1788, %v1900
        %v1902 = vpop.f32.mrb[0].mxu0
        %v1903 = vadd.f32 %v1790, %v1902
        %v1904 = vpop.f32.mrb[0].mxu0
        %v1905 = vadd.f32 %v1792, %v1904
        %1906 = vmatprep.mubr.bf16.mxu0 %v1324
        %1907 = vmatmul.mubr.bf16.gmra.mrb[0].mxu0 %v1323
        %v1908 = vpop.f32.mrb[0].mxu0
        %v1909 = vadd.f32 %v1796, %v1908
        %v1910 = vpop.f32.mrb[0].mxu0
        %v1911 = vadd.f32 %v1798, %v1910
        %v1912 = vpop.f32.mrb[0].mxu0
        %v1913 = vadd.f32 %v1800, %v1912
        %v1914 = vpop.f32.mrb[0].mxu0
        %v1915 = vadd.f32 %v1802, %v1914
        %1916 = vmatprep.mubr.bf16.mxu0 %v1328
        %1917 = vmatmul.mubr.bf16.gmra.mrb[0].mxu0 %v1327
        %v1918 = vpop.f32.mrb[0].mxu0
        %v1919 = vadd.f32 %v1806, %v1918
        %v1920 = vpop.f32.mrb[0].mxu0
        %v1921 = vadd.f32 %v1808, %v1920
        %v1922 = vpop.f32.mrb[0].mxu0
        %v1923 = vadd.f32 %v1810, %v1922
        %v1924 = vpop.f32.mrb[0].mxu0
        %v1925 = vadd.f32 %v1812, %v1924
        %1926 = vmatprep.mubr.bf16.mxu0 %v1332
        %1927 = vmatmul.mubr.bf16.gmra.mrb[0].mxu0 %v1331
        %v1928 = vpop.f32.mrb[0].mxu0
        %v1929 = vadd.f32 %v1816, %v1928
        %v1930 = vpop.f32.mrb[0].mxu0
        %v1931 = vadd.f32 %v1818, %v1930
        %v1932 = vpop.f32.mrb[0].mxu0
        %v1933 = vadd.f32 %v1820, %v1932
        %v1934 = vpop.f32.mrb[0].mxu0
        %v1935 = vadd.f32 %v1822, %v1934
        %1936 = vmatprep.mubr.bf16.mxu0 %v1336
        %1937 = vmatmul.mubr.bf16.gmra.mrb[0].mxu0 %v1335
        %v1938 = vpop.f32.mrb[0].mxu0
        %v1939 = vadd.f32 %v1826, %v1938
        %v1940 = vpop.f32.mrb[0].mxu0
        %v1941 = vadd.f32 %v1828, %v1940
        %v1942 = vpop.f32.mrb[0].mxu0
        %v1943 = vadd.f32 %v1830, %v1942
        %v1944 = vpop.f32.mrb[0].mxu0
        %v1945 = vadd.f32 %v1832, %v1944
        %1946 = vdwg.mxu0
        %v1947 = vadd.f32 %v1273, %v1869
        %v1948 = vadd.f32 %v1274, %v1871
        %v1949 = vadd.f32 %v1275, %v1873
        %v1950 = vadd.f32 %v1276, %v1875
        %v1951 = vadd.f32 %v1277, %v1879
        %v1952 = vadd.f32 %v1278, %v1881
        %v1953 = vadd.f32 %v1279, %v1883
        %v1954 = vadd.f32 %v1280, %v1885
        %v1955 = vadd.f32 %v1281, %v1889
        %v1956 = vadd.f32 %v1282, %v1891
        %v1957 = vadd.f32 %v1283, %v1893
        %v1958 = vadd.f32 %v1284, %v1895
        %v1959 = vadd.f32 %v1285, %v1899
        %v1960 = vadd.f32 %v1286, %v1901
        %v1961 = vadd.f32 %v1287, %v1903
        %v1962 = vadd.f32 %v1288, %v1905
        %v1963 = vadd.f32 %v1289, %v1909
        %v1964 = vadd.f32 %v1290, %v1911
        %v1965 = vadd.f32 %v1291, %v1913
        %v1966 = vadd.f32 %v1292, %v1915
        %v1967 = vadd.f32 %v1293, %v1919
        %v1968 = vadd.f32 %v1294, %v1921
        %v1969 = vadd.f32 %v1295, %v1923
        %v1970 = vadd.f32 %v1296, %v1925
        %v1971 = vadd.f32 %v1297, %v1929
        %v1972 = vadd.f32 %v1298, %v1931
        %v1973 = vadd.f32 %v1299, %v1933
        %v1974 = vadd.f32 %v1300, %v1935
        %v1975 = vadd.f32 %v1301, %v1939
        %v1976 = vadd.f32 %v1302, %v1941
        %v1977 = vadd.f32 %v1303, %v1943
        %v1978 = vadd.f32 %v1304, %v1945
        %1979 = vst [vmem:[#allocation2] sm:$0xff] %v1947
        %1980 = vst [vmem:[#allocation2 + $0x8] sm:$0xff] %v1948
        %1981 = vst [vmem:[#allocation2 + $0x10] sm:$0xff] %v1949
        %1982 = vst [vmem:[#allocation2 + $0x18] sm:$0xff] %v1950
        %1983 = vst [vmem:[#allocation2 + $0x20] sm:$0xff] %v1951
        %1984 = vst [vmem:[#allocation2 + $0x28] sm:$0xff] %v1952
        %1985 = vst [vmem:[#allocation2 + $0x30] sm:$0xff] %v1953
        %1986 = vst [vmem:[#allocation2 + $0x38] sm:$0xff] %v1954
        %1987 = vst [vmem:[#allocation2 + $0x40] sm:$0xff] %v1955
        %1988 = vst [vmem:[#allocation2 + $0x48] sm:$0xff] %v1956
        %1989 = vst [vmem:[#allocation2 + $0x50] sm:$0xff] %v1957
        %1990 = vst [vmem:[#allocation2 + $0x58] sm:$0xff] %v1958
        %1991 = vst [vmem:[#allocation2 + $0x60] sm:$0xff] %v1959
        %1992 = vst [vmem:[#allocation2 + $0x68] sm:$0xff] %v1960
        %1993 = vst [vmem:[#allocation2 + $0x70] sm:$0xff] %v1961
        %1994 = vst [vmem:[#allocation2 + $0x78] sm:$0xff] %v1962
        %1995 = vst [vmem:[#allocation2 + $0x80] sm:$0xff] %v1963
        %1996 = vst [vmem:[#allocation2 + $0x88] sm:$0xff] %v1964
        %1997 = vst [vmem:[#allocation2 + $0x90] sm:$0xff] %v1965
        %1998 = vst [vmem:[#allocation2 + $0x98] sm:$0xff] %v1966
        %1999 = vst [vmem:[#allocation2 + $0xa0] sm:$0xff] %v1967
        %2000 = vst [vmem:[#allocation2 + $0xa8] sm:$0xff] %v1968
        %2001 = vst [vmem:[#allocation2 + $0xb0] sm:$0xff] %v1969
        %2002 = vst [vmem:[#allocation2 + $0xb8] sm:$0xff] %v1970
        %2003 = vst [vmem:[#allocation2 + $0xc0] sm:$0xff] %v1971
        %2004 = vst [vmem:[#allocation2 + $0xc8] sm:$0xff] %v1972
        %2005 = vst [vmem:[#allocation2 + $0xd0] sm:$0xff] %v1973
        %2006 = vst [vmem:[#allocation2 + $0xd8] sm:$0xff] %v1974
        %2007 = vst [vmem:[#allocation2 + $0xe0] sm:$0xff] %v1975
        %2008 = vst [vmem:[#allocation2 + $0xe8] sm:$0xff] %v1976
        %2009 = vst [vmem:[#allocation2 + $0xf0] sm:$0xff] %v1977
        %2010 = vst [vmem:[#allocation2 + $0xf8] sm:$0xff] %v1978
        %p2011 = scmp.eq.s32.totalorder %s22, 1
        // Predicated region
        $region68: #{ffw_forward.1} parent=58 // pred_check
          %p2012 = pneg %p2011
        $region69: #{ffw_forward.1} parent=58 // pred_check_branch
          %2014 = sbr.rel (%p2012) target = $region71
        $region70: #{ffw_forward.1} parent=58 // pred_region
          %v2015 = vld [vmem:[#allocation2] sm:$0xff]
          %v2016 = vld [vmem:[#allocation2 + $0x8] sm:$0xff]
          %v2017 = vld [vmem:[#allocation2 + $0x10] sm:$0xff]
          %v2018 = vld [vmem:[#allocation2 + $0x18] sm:$0xff]
          %v2019 = vld [vmem:[#allocation2 + $0x20] sm:$0xff]
          %v2020 = vld [vmem:[#allocation2 + $0x28] sm:$0xff]
          %v2021 = vld [vmem:[#allocation2 + $0x30] sm:$0xff]
          %v2022 = vld [vmem:[#allocation2 + $0x38] sm:$0xff]
          %v2023 = vld [vmem:[#allocation2 + $0x40] sm:$0xff]
          %v2024 = vld [vmem:[#allocation2 + $0x48] sm:$0xff]
          %v2025 = vld [vmem:[#allocation2 + $0x50] sm:$0xff]
          %v2026 = vld [vmem:[#allocation2 + $0x58] sm:$0xff]
          %v2027 = vld [vmem:[#allocation2 + $0x60] sm:$0xff]
          %v2028 = vld [vmem:[#allocation2 + $0x68] sm:$0xff]
          %v2029 = vld [vmem:[#allocation2 + $0x70] sm:$0xff]
          %v2030 = vld [vmem:[#allocation2 + $0x78] sm:$0xff]
          %v2031 = vld [vmem:[#allocation2 + $0x80] sm:$0xff]
          %v2032 = vld [vmem:[#allocation2 + $0x88] sm:$0xff]
          %v2033 = vld [vmem:[#allocation2 + $0x90] sm:$0xff]
          %v2034 = vld [vmem:[#allocation2 + $0x98] sm:$0xff]
          %v2035 = vld [vmem:[#allocation2 + $0xa0] sm:$0xff]
          %v2036 = vld [vmem:[#allocation2 + $0xa8] sm:$0xff]
          %v2037 = vld [vmem:[#allocation2 + $0xb0] sm:$0xff]
          %v2038 = vld [vmem:[#allocation2 + $0xb8] sm:$0xff]
          %v2039 = vld [vmem:[#allocation2 + $0xc0] sm:$0xff]
          %v2040 = vld [vmem:[#allocation2 + $0xc8] sm:$0xff]
          %v2041 = vld [vmem:[#allocation2 + $0xd0] sm:$0xff]
          %v2042 = vld [vmem:[#allocation2 + $0xd8] sm:$0xff]
          %v2043 = vld [vmem:[#allocation2 + $0xe0] sm:$0xff]
          %v2044 = vld [vmem:[#allocation2 + $0xe8] sm:$0xff]
          %v2045 = vld [vmem:[#allocation2 + $0xf0] sm:$0xff]
          %v2046 = vld [vmem:[#allocation2 + $0xf8] sm:$0xff]
          %v2047 = vld [vmem:[%s4] sm:$0x3]
          %v2049 = vlaneseq
          %v2050 = vshrl.u32 %v2049, 7
          %v2051 = vsub.s32 0, %v2050
          %v2052 = vrot.slane %v2047, %v2051
          %v2053 = vlaneseq
          %v2054 = vshrl.u32 %v2053, 7
          %v2055 = vsub.s32 1, %v2054
          %v2056 = vrot.slane %v2047, %v2055
          %v2059 = vadd.f32 %v2015, %v2052
          %v2060 = vadd.f32 %v2016, %v2056
          %v2061 = vadd.f32 %v2017, %v2052
          %v2062 = vadd.f32 %v2018, %v2056
          %v2063 = vadd.f32 %v2019, %v2052
          %v2064 = vadd.f32 %v2020, %v2056
          %v2065 = vadd.f32 %v2021, %v2052
          %v2066 = vadd.f32 %v2022, %v2056
          %v2067 = vadd.f32 %v2023, %v2052
          %v2068 = vadd.f32 %v2024, %v2056
          %v2069 = vadd.f32 %v2025, %v2052
          %v2070 = vadd.f32 %v2026, %v2056
          %v2071 = vadd.f32 %v2027, %v2052
          %v2072 = vadd.f32 %v2028, %v2056
          %v2073 = vadd.f32 %v2029, %v2052
          %v2074 = vadd.f32 %v2030, %v2056
          %v2075 = vadd.f32 %v2031, %v2052
          %v2076 = vadd.f32 %v2032, %v2056
          %v2077 = vadd.f32 %v2033, %v2052
          %v2078 = vadd.f32 %v2034, %v2056
          %v2079 = vadd.f32 %v2035, %v2052
          %v2080 = vadd.f32 %v2036, %v2056
          %v2081 = vadd.f32 %v2037, %v2052
          %v2082 = vadd.f32 %v2038, %v2056
          %v2083 = vadd.f32 %v2039, %v2052
          %v2084 = vadd.f32 %v2040, %v2056
          %v2085 = vadd.f32 %v2041, %v2052
          %v2086 = vadd.f32 %v2042, %v2056
          %v2087 = vadd.f32 %v2043, %v2052
          %v2088 = vadd.f32 %v2044, %v2056
          %v2089 = vadd.f32 %v2045, %v2052
          %v2090 = vadd.f32 %v2046, %v2056
          %2091 = vst [vmem:[#allocation4] sm:$0xff] %v2059
          %2092 = vst [vmem:[#allocation4 + $0x8] sm:$0xff] %v2060
          %2093 = vst [vmem:[#allocation4 + $0x10] sm:$0xff] %v2061
          %2094 = vst [vmem:[#allocation4 + $0x18] sm:$0xff] %v2062
          %2095 = vst [vmem:[#allocation4 + $0x20] sm:$0xff] %v2063
          %2096 = vst [vmem:[#allocation4 + $0x28] sm:$0xff] %v2064
          %2097 = vst [vmem:[#allocation4 + $0x30] sm:$0xff] %v2065
          %2098 = vst [vmem:[#allocation4 + $0x38] sm:$0xff] %v2066
          %2099 = vst [vmem:[#allocation4 + $0x40] sm:$0xff] %v2067
          %2100 = vst [vmem:[#allocation4 + $0x48] sm:$0xff] %v2068
          %2101 = vst [vmem:[#allocation4 + $0x50] sm:$0xff] %v2069
          %2102 = vst [vmem:[#allocation4 + $0x58] sm:$0xff] %v2070
          %2103 = vst [vmem:[#allocation4 + $0x60] sm:$0xff] %v2071
          %2104 = vst [vmem:[#allocation4 + $0x68] sm:$0xff] %v2072
          %2105 = vst [vmem:[#allocation4 + $0x70] sm:$0xff] %v2073
          %2106 = vst [vmem:[#allocation4 + $0x78] sm:$0xff] %v2074
          %2107 = vst [vmem:[#allocation4 + $0x80] sm:$0xff] %v2075
          %2108 = vst [vmem:[#allocation4 + $0x88] sm:$0xff] %v2076
          %2109 = vst [vmem:[#allocation4 + $0x90] sm:$0xff] %v2077
          %2110 = vst [vmem:[#allocation4 + $0x98] sm:$0xff] %v2078
          %2111 = vst [vmem:[#allocation4 + $0xa0] sm:$0xff] %v2079
          %2112 = vst [vmem:[#allocation4 + $0xa8] sm:$0xff] %v2080
          %2113 = vst [vmem:[#allocation4 + $0xb0] sm:$0xff] %v2081
          %2114 = vst [vmem:[#allocation4 + $0xb8] sm:$0xff] %v2082
          %2115 = vst [vmem:[#allocation4 + $0xc0] sm:$0xff] %v2083
          %2116 = vst [vmem:[#allocation4 + $0xc8] sm:$0xff] %v2084
          %2117 = vst [vmem:[#allocation4 + $0xd0] sm:$0xff] %v2085
          %2118 = vst [vmem:[#allocation4 + $0xd8] sm:$0xff] %v2086
          %2119 = vst [vmem:[#allocation4 + $0xe0] sm:$0xff] %v2087
          %2120 = vst [vmem:[#allocation4 + $0xe8] sm:$0xff] %v2088
          %2121 = vst [vmem:[#allocation4 + $0xf0] sm:$0xff] %v2089
          %2122 = vst [vmem:[#allocation4 + $0xf8] sm:$0xff] %v2090
        $region71: #{ffw_forward.1} parent=58 // pred_fallthru
          _
        // Predicated region
        $region72: #{ffw_forward.1} parent=58 // pred_check
          %p2123 = pneg %p172
        $region73: #{ffw_forward.1} parent=58 // pred_check_branch
          %2125 = sbr.rel (%p2123) target = $region75
        $region74: #{ffw_forward.1} parent=58 // pred_region
          %s2126 = smul.u32 16, %s21
          %s2128 = ssub.s32 4096, 4096
          %2129 = vsyncadd [#allocation5], %s2128
          %s2130 = smul.addr %s2126, 2
          %s2131 = smul.addr %s2130, 128
          %s2132 = scalar_lea.hbm %s5, %s2131
          %s2133 = sshll.u32 [#allocation4], 4
          %s2134 = int_to_ptr.vmem [resolvable:$true] %s2133
          %2139 = dma.vmem_to_hbm [thread:$0]  %s2134, 4096, %s2132, [#allocation5], 256, 256, 16
        $region75: #{ffw_forward.1} parent=58 // pred_fallthru
          _
        // Predicated region
        $region76: #{ffw_forward.1} parent=58 // pred_check
          %p2140 = pneg %p172
        $region77: #{ffw_forward.1} parent=58 // pred_check_branch
          %2142 = sbr.rel (%p2140) target = $region79
        $region78: #{ffw_forward.1} parent=58 // pred_region
          %2143 = dma.done [#allocation5], 4096
        $region79: #{ffw_forward.1} parent=58 // pred_fallthru
          _
      $region59: #{ffw_forward.1} parent=5 // pred_fallthru
        _
      %p2144 = scmp.le.s32.totalorder 2, %s12
      // Predicated region
      $region80: #{ffw_forward.1} parent=5 // pred_check
        %p2145 = pneg %p2144
      $region81: #{ffw_forward.1} parent=5 // pred_check_branch
        %2147 = sbr.rel (%p2145) target = $region83
      $region82: #{ffw_forward.1} parent=5 // pred_region
        %s2148 = ssub.s32 %s12, 2
      $region83: #{ffw_forward.1} parent=5 // pred_fallthru
        _
    $region6: #{ffw_forward.1} parent=1 // loop_footer
      %s16 = sadd.s32 1, %s12
    $region7: #{ffw_forward.1} parent=1 // loop_footer_branch
      %11 = sbr.rel target = $region3
    $region8: #{ffw_forward.1} parent=1 // loop_exit
      _
    %2149 = vsyncpa [#allocation5], 1
    %s2150 = scalar_lea.sflag [#allocation5], 1
    %2151 = vsyncpa %s2150, 1

</llo_original>
